<compile_context>
chip_gen: v7x
topology: tpu7x:2x2x1
jax: 0.10.0
libtpu: 0.0.40
codegen_flags: <defaults>
</compile_context>

<pallas_src>
import functools

import jax
import jax.numpy as jnp
from jax import lax
from jax.experimental import pallas as pl
from jax.experimental.pallas import tpu as pltpu

KH = KW = 3
PAD = 1
EPS = 1e-5


def _conv_stats_kernel(w_ref, x_ref, conv_ref, stats_ref, *, wp, w_valid):
    """Pass 1 (one image per grid step): 3x3 conv + per-channel BN partials.

    w_ref    : (9, Cout, Cin)  weight, tap-major (k = kh*3 + kw)
    x_ref    : (Cin, Lp)       zero-padded image, spatial flattened with the
                               padded width Wp (Lp = (H+2)*Wp + 2 slack)
    conv_ref : (Cout, H*Wp)    conv output in padded-width layout (lane-dense)
    stats_ref: (Cout, 2)       [:, 0] = sum, [:, 1] = sum-of-squares over the
                               valid (non-pad) columns of this image
    """
    mp = conv_ref.shape[1]                                    # H * Wp
    acc = None
    for kh in range(KH):
        for kw in range(KW):
            off = kh * wp + kw                                # static lane offset
            tap = x_ref[:, off:off + mp]                      # (Cin, H*Wp)
            part = jnp.dot(w_ref[kh * KW + kw], tap,
                           preferred_element_type=jnp.float32)
            acc = part if acc is None else acc + part
    conv_ref[...] = acc.astype(conv_ref.dtype)

    # Columns x in [W, Wp) of every row are wrap-around garbage in this layout:
    # exclude them from the batch statistics (they are also never written out).
    col = lax.broadcasted_iota(jnp.int32, (1, mp), 1) % wp
    masked = jnp.where(col < w_valid, acc, 0.0)
    s1 = jnp.sum(masked, axis=1, keepdims=True)               # (Cout, 1)
    s2 = jnp.sum(masked * masked, axis=1, keepdims=True)      # (Cout, 1)
    # TODO(synk): at production Cout, a lane-major (2, Cout) stats layout (or a
    # VMEM scratch accumulator) avoids this narrow masked store.
    stats_ref[...] = jnp.concatenate([s1, s2], axis=1)


def _bn_relu_kernel(conv_ref, scale_ref, shift_ref, o_ref):
    """Pass 2: y = conv * scale + shift ; ReLU.  f32 elementwise math, NCHW out.

    conv_ref : (Cout, TH, Wp)  conv tile in padded-width layout (compute dtype)
    scale_ref: (Cout, 1, W)    gamma / sqrt(var + eps)
    shift_ref: (Cout, 1, W)    beta - mean * scale
    o_ref    : (Cout, TH, W)   final NCHW output tile (f32)
    """
    w_cols = o_ref.shape[-1]
    y = conv_ref[:, :, :w_cols].astype(jnp.float32)           # strip pad columns
    y = y * scale_ref[...] + shift_ref[...]
    o_ref[...] = jnp.maximum(y, 0.0).astype(o_ref.dtype)


def _vmem_limit_bytes():
    # Stay within the smallest generation's VMEM (v7x: 64 MiB) unless the
    # hardware reports more (v5e/v6e: 128 MiB -> allow bigger tiles).
    cap = 64 * 1024 * 1024
    try:
        cap = int(pltpu.get_tpu_info().vmem_capacity_bytes)
    except Exception:
        pass
    return min(cap * 3 // 4, 96 * 1024 * 1024)


def _pick_row_tile(h, row_bytes, budget=4 * 1024 * 1024):
    """Largest power-of-two, multiple-of-8 row tile dividing h that fits the
    budget and leaves >= 2 tiles (so the parallel grid feeds both v7x TCs)."""
    best = None
    th = 8
    while th <= h:
        if h % th == 0 and th * row_bytes <= budget and (h // th) >= 2:
            best = th
        th *= 2
    if best is not None:
        return best
    return 8 if h % 8 == 0 else h


def same_block2d(x_nchw, w_oihw, bias, gamma, beta, *, compute_dtype=jnp.bfloat16):
    """SameBlock2d forward: (N, Cin, H, W) f32 -> (N, Cout, H, W) f32.

    `bias` is accepted for API parity with nn.Conv2d but not applied: BatchNorm2d
    with batch statistics removes a constant per-channel shift exactly.
    """
    del bias
    N, Cin, H, W = x_nchw.shape
    Cout = w_oihw.shape[0]
    Hp, Wp = H + 2 * PAD, W + 2 * PAD
    Mp = H * Wp                        # padded-width spatial size per image
    Lp = Hp * Wp + 2                   # +2 slack keeps the last tap in bounds

    # ---- pass-1 operands (~1.1x |x| of traffic instead of the old 9x im2col) --
    x_pad = jnp.pad(x_nchw, ((0, 0), (0, 0), (PAD, PAD), (PAD, PAD)))
    x_flat = x_pad.reshape(N, Cin, Hp * Wp)                   # bitcast reshape
    x_flat = jnp.pad(x_flat, ((0, 0), (0, 0), (0, 2))).astype(compute_dtype)
    # OIHW -> (KH*KW, Cout, Cin); tap index k = kh*KW + kw matches the kernel.
    w_taps = jnp.transpose(w_oihw, (2, 3, 0, 1)).reshape(KH * KW, Cout, Cin)
    w_taps = w_taps.astype(compute_dtype)

    vmem_limit = _vmem_limit_bytes()

    # ---- pass 1: conv (no bias) + per-image BN partial statistics ------------
    # TODO(synk): for large Cin*H*W, row-tile pass 1 with an H halo (manual DMA
    # or pl.Element windows) and tile Cout so one step fits v7x's 64 MiB VMEM;
    # mark the resident weight pipeline_mode=pl.Buffered(1) at production sizes.
    conv_pad, stats = pl.pallas_call(
        functools.partial(_conv_stats_kernel, wp=Wp, w_valid=W),
        out_shape=(
            jax.ShapeDtypeStruct((N, Cout, Mp), compute_dtype),
            jax.ShapeDtypeStruct((N, Cout, 2), jnp.float32),
        ),
        grid=(N,),
        in_specs=[
            pl.BlockSpec((KH * KW, Cout, Cin), lambda n: (0, 0, 0)),   # resident
            pl.BlockSpec((None, Cin, Lp), lambda n: (n, 0, 0)),
        ],
        out_specs=(
            pl.BlockSpec((None, Cout, Mp), lambda n: (n, 0, 0)),
            pl.BlockSpec((None, Cout, 2), lambda n: (n, 0, 0)),
        ),
        compiler_params=pltpu.CompilerParams(
            dimension_semantics=("parallel",),
            vmem_limit_bytes=vmem_limit,
        ),
    )(w_taps, x_flat)

    # ---- finalize BN statistics (O(Cout) scalar work in the wrapper) ---------
    count = N * H * W
    s = jnp.sum(stats, axis=0)                                # (Cout, 2)
    mean = s[:, 0] / count
    var = jnp.maximum(s[:, 1] / count - mean * mean, 0.0)     # biased batch var
    inv_std = lax.rsqrt(var + EPS)
    scale = gamma.astype(jnp.float32) * inv_std
    shift = beta.astype(jnp.float32) - mean * scale
    scale_b = jnp.broadcast_to(scale[:, None, None], (Cout, 1, W))
    shift_b = jnp.broadcast_to(shift[:, None, None], (Cout, 1, W))

    # ---- pass 2: affine BN + ReLU, written directly in NCHW ------------------
    conv4 = conv_pad.reshape(N, Cout, H, Wp)                  # bitcast reshape
    th = _pick_row_tile(H, row_bytes=Cout * Wp * (conv4.dtype.itemsize + 4))
    out = pl.pallas_call(
        _bn_relu_kernel,
        out_shape=jax.ShapeDtypeStruct((N, Cout, H, W), jnp.float32),
        grid=(N, H // th),
        in_specs=[
            pl.BlockSpec((None, Cout, th, Wp), lambda n, t: (n, 0, t, 0)),
            pl.BlockSpec((Cout, 1, W), lambda n, t: (0, 0, 0)),
            pl.BlockSpec((Cout, 1, W), lambda n, t: (0, 0, 0)),
        ],
        out_specs=pl.BlockSpec((None, Cout, th, W), lambda n, t: (n, 0, t, 0)),
        compiler_params=pltpu.CompilerParams(
            dimension_semantics=("parallel", "parallel"),
            vmem_limit_bytes=vmem_limit,
        ),
    )(conv4, scale_b, shift_b)
    return out


def reference_forward(x_nchw, w_oihw, bias, gamma, beta):
    out = lax.conv_general_dilated(
        x_nchw, w_oihw, window_strides=(1, 1),
        padding=((PAD, PAD), (PAD, PAD)),
        dimension_numbers=("NCHW", "OIHW", "NCHW"))
    out = out + bias[None, :, None, None]
    mean = out.mean(axis=(0, 2, 3), keepdims=True)
    var = ((out - mean) ** 2).mean(axis=(0, 2, 3), keepdims=True)
    y = (out - mean) / jnp.sqrt(var + EPS)
    y = y * gamma[None, :, None, None] + beta[None, :, None, None]
    return jnp.maximum(y, 0.0)


if __name__ == "__main__":
    N, Cin, Cout, H, W = 2, 4, 8, 16, 16

    key = jax.random.PRNGKey(0)
    kx, kw_, kb, kg, kbeta = jax.random.split(key, 5)

    x = jax.random.normal(kx, (N, Cin, H, W), jnp.float32)
    weight = jax.random.normal(kw_, (Cout, Cin, KH, KW), jnp.float32) * 0.1
    bias = jax.random.normal(kb, (Cout,), jnp.float32) * 0.1
    gamma = 1.0 + 0.1 * jax.random.normal(kg, (Cout,), jnp.float32)
    beta = 0.1 * jax.random.normal(kbeta, (Cout,), jnp.float32)

    ref = reference_forward(x, weight, bias, gamma, beta)

    # f32 MXU operands + f32 conv intermediate: tight check.
    fwd_f32 = jax.jit(functools.partial(same_block2d, compute_dtype=jnp.float32))
    out_f32 = jax.block_until_ready(fwd_f32(x, weight, bias, gamma, beta))
    assert out_f32.shape == (N, Cout, H, W)
    assert jnp.allclose(out_f32, ref, atol=2e-3, rtol=2e-3), "f32 mismatch vs reference"

    # Default path: bf16 MXU operands + bf16 conv intermediate (f32 accumulation,
    # f32 BN/ReLU math) - MXU-native on v5e / v6e / v7x.
    fwd_bf16 = jax.jit(same_block2d)
    out_bf16 = jax.block_until_ready(fwd_bf16(x, weight, bias, gamma, beta))
    assert jnp.allclose(out_bf16, ref, atol=5e-2, rtol=5e-2), "bf16 mismatch vs reference"

    print("KERNEL_OK")
</pallas_src>

<mosaic_0001>
module attributes {stable_mosaic.version = 11 : i64} {
  func.func @_conv_stats_kernel(%arg0: i32, %arg1: memref<9x8x4xf32, #tpu.memory_space<vmem>>, %arg2: memref<1x4x326xf32, #tpu.memory_space<vmem>>, %arg3: memref<1x8x288xf32, #tpu.memory_space<vmem>>, %arg4: memref<1x8x2xf32, #tpu.memory_space<vmem>>) attributes {dimension_semantics = [#tpu.dimension_semantics<parallel>], iteration_bounds = array<i64: 2>, scalar_prefetch = 0 : i64, scratch_operands = 0 : i64, tpu.core_type = #tpu.core_type<tc>, window_params = [{pipeline_mode = #tpu.pipeline_mode<synchronous>, transform_indices = @transform_0, window_bounds = array<i64: 9, 8, 4>}, {transform_indices = @transform_1, window_bounds = array<i64: 1, 4, 326>}, {transform_indices = @transform_2, window_bounds = array<i64: 1, 8, 288>}, {transform_indices = @transform_3, window_bounds = array<i64: 1, 8, 2>}]} {
    %c0 = arith.constant 0 : index
    %c0_0 = arith.constant 0 : index
    %c0_1 = arith.constant 0 : index
    %0 = vector.load %arg2[%c0, %c0_0, %c0_1] : memref<1x4x326xf32, #tpu.memory_space<vmem>>, vector<1x4x288xf32>
    %1 = vector.shape_cast %0 : vector<1x4x288xf32> to vector<4x288xf32>
    %c0_2 = arith.constant 0 : index
    %c0_3 = arith.constant 0 : index
    %c0_4 = arith.constant 0 : index
    %2 = vector.load %arg1[%c0_2, %c0_3, %c0_4] : memref<9x8x4xf32, #tpu.memory_space<vmem>>, vector<1x8x4xf32>
    %3 = vector.shape_cast %2 : vector<1x8x4xf32> to vector<8x4xf32>
    %cst = arith.constant dense<0.000000e+00> : vector<8x288xf32>
    %4 = tpu.matmul %3, %1, %cst {dimension_numbers = #tpu.dot_dimension_numbers<[1], [0], [0], [1], [0, 0, 1, 1], [], []>} : vector<8x4xf32>, vector<4x288xf32>, vector<8x288xf32> -> vector<8x288xf32>
    %c0_5 = arith.constant 0 : index
    %c0_6 = arith.constant 0 : index
    %c1 = arith.constant 1 : index
    %5 = vector.load %arg2[%c0_5, %c0_6, %c1] : memref<1x4x326xf32, #tpu.memory_space<vmem>>, vector<1x4x288xf32>
    %6 = vector.shape_cast %5 : vector<1x4x288xf32> to vector<4x288xf32>
    %c1_7 = arith.constant 1 : index
    %c0_8 = arith.constant 0 : index
    %c0_9 = arith.constant 0 : index
    %7 = vector.load %arg1[%c1_7, %c0_8, %c0_9] : memref<9x8x4xf32, #tpu.memory_space<vmem>>, vector<1x8x4xf32>
    %8 = vector.shape_cast %7 : vector<1x8x4xf32> to vector<8x4xf32>
    %cst_10 = arith.constant dense<0.000000e+00> : vector<8x288xf32>
    %9 = tpu.matmul %8, %6, %cst_10 {dimension_numbers = #tpu.dot_dimension_numbers<[1], [0], [0], [1], [0, 0, 1, 1], [], []>} : vector<8x4xf32>, vector<4x288xf32>, vector<8x288xf32> -> vector<8x288xf32>
    %10 = arith.addf %4, %9 : vector<8x288xf32>
    %c0_11 = arith.constant 0 : index
    %c0_12 = arith.constant 0 : index
    %c2 = arith.constant 2 : index
    %11 = vector.load %arg2[%c0_11, %c0_12, %c2] : memref<1x4x326xf32, #tpu.memory_space<vmem>>, vector<1x4x288xf32>
    %12 = vector.shape_cast %11 : vector<1x4x288xf32> to vector<4x288xf32>
    %c2_13 = arith.constant 2 : index
    %c0_14 = arith.constant 0 : index
    %c0_15 = arith.constant 0 : index
    %13 = vector.load %arg1[%c2_13, %c0_14, %c0_15] : memref<9x8x4xf32, #tpu.memory_space<vmem>>, vector<1x8x4xf32>
    %14 = vector.shape_cast %13 : vector<1x8x4xf32> to vector<8x4xf32>
    %cst_16 = arith.constant dense<0.000000e+00> : vector<8x288xf32>
    %15 = tpu.matmul %14, %12, %cst_16 {dimension_numbers = #tpu.dot_dimension_numbers<[1], [0], [0], [1], [0, 0, 1, 1], [], []>} : vector<8x4xf32>, vector<4x288xf32>, vector<8x288xf32> -> vector<8x288xf32>
    %16 = arith.addf %10, %15 : vector<8x288xf32>
    %c0_17 = arith.constant 0 : index
    %c0_18 = arith.constant 0 : index
    %c18 = arith.constant 18 : index
    %17 = vector.load %arg2[%c0_17, %c0_18, %c18] : memref<1x4x326xf32, #tpu.memory_space<vmem>>, vector<1x4x288xf32>
    %18 = vector.shape_cast %17 : vector<1x4x288xf32> to vector<4x288xf32>
    %c3 = arith.constant 3 : index
    %c0_19 = arith.constant 0 : index
    %c0_20 = arith.constant 0 : index
    %19 = vector.load %arg1[%c3, %c0_19, %c0_20] : memref<9x8x4xf32, #tpu.memory_space<vmem>>, vector<1x8x4xf32>
    %20 = vector.shape_cast %19 : vector<1x8x4xf32> to vector<8x4xf32>
    %cst_21 = arith.constant dense<0.000000e+00> : vector<8x288xf32>
    %21 = tpu.matmul %20, %18, %cst_21 {dimension_numbers = #tpu.dot_dimension_numbers<[1], [0], [0], [1], [0, 0, 1, 1], [], []>} : vector<8x4xf32>, vector<4x288xf32>, vector<8x288xf32> -> vector<8x288xf32>
    %22 = arith.addf %16, %21 : vector<8x288xf32>
    %c0_22 = arith.constant 0 : index
    %c0_23 = arith.constant 0 : index
    %c19 = arith.constant 19 : index
    %23 = vector.load %arg2[%c0_22, %c0_23, %c19] : memref<1x4x326xf32, #tpu.memory_space<vmem>>, vector<1x4x288xf32>
    %24 = vector.shape_cast %23 : vector<1x4x288xf32> to vector<4x288xf32>
    %c4 = arith.constant 4 : index
    %c0_24 = arith.constant 0 : index
    %c0_25 = arith.constant 0 : index
    %25 = vector.load %arg1[%c4, %c0_24, %c0_25] : memref<9x8x4xf32, #tpu.memory_space<vmem>>, vector<1x8x4xf32>
    %26 = vector.shape_cast %25 : vector<1x8x4xf32> to vector<8x4xf32>
    %cst_26 = arith.constant dense<0.000000e+00> : vector<8x288xf32>
    %27 = tpu.matmul %26, %24, %cst_26 {dimension_numbers = #tpu.dot_dimension_numbers<[1], [0], [0], [1], [0, 0, 1, 1], [], []>} : vector<8x4xf32>, vector<4x288xf32>, vector<8x288xf32> -> vector<8x288xf32>
    %28 = arith.addf %22, %27 : vector<8x288xf32>
    %c0_27 = arith.constant 0 : index
    %c0_28 = arith.constant 0 : index
    %c20 = arith.constant 20 : index
    %29 = vector.load %arg2[%c0_27, %c0_28, %c20] : memref<1x4x326xf32, #tpu.memory_space<vmem>>, vector<1x4x288xf32>
    %30 = vector.shape_cast %29 : vector<1x4x288xf32> to vector<4x288xf32>
    %c5 = arith.constant 5 : index
    %c0_29 = arith.constant 0 : index
    %c0_30 = arith.constant 0 : index
    %31 = vector.load %arg1[%c5, %c0_29, %c0_30] : memref<9x8x4xf32, #tpu.memory_space<vmem>>, vector<1x8x4xf32>
    %32 = vector.shape_cast %31 : vector<1x8x4xf32> to vector<8x4xf32>
    %cst_31 = arith.constant dense<0.000000e+00> : vector<8x288xf32>
    %33 = tpu.matmul %32, %30, %cst_31 {dimension_numbers = #tpu.dot_dimension_numbers<[1], [0], [0], [1], [0, 0, 1, 1], [], []>} : vector<8x4xf32>, vector<4x288xf32>, vector<8x288xf32> -> vector<8x288xf32>
    %34 = arith.addf %28, %33 : vector<8x288xf32>
    %c0_32 = arith.constant 0 : index
    %c0_33 = arith.constant 0 : index
    %c36 = arith.constant 36 : index
    %35 = vector.load %arg2[%c0_32, %c0_33, %c36] : memref<1x4x326xf32, #tpu.memory_space<vmem>>, vector<1x4x288xf32>
    %36 = vector.shape_cast %35 : vector<1x4x288xf32> to vector<4x288xf32>
    %c6 = arith.constant 6 : index
    %c0_34 = arith.constant 0 : index
    %c0_35 = arith.constant 0 : index
    %37 = vector.load %arg1[%c6, %c0_34, %c0_35] : memref<9x8x4xf32, #tpu.memory_space<vmem>>, vector<1x8x4xf32>
    %38 = vector.shape_cast %37 : vector<1x8x4xf32> to vector<8x4xf32>
    %cst_36 = arith.constant dense<0.000000e+00> : vector<8x288xf32>
    %39 = tpu.matmul %38, %36, %cst_36 {dimension_numbers = #tpu.dot_dimension_numbers<[1], [0], [0], [1], [0, 0, 1, 1], [], []>} : vector<8x4xf32>, vector<4x288xf32>, vector<8x288xf32> -> vector<8x288xf32>
    %40 = arith.addf %34, %39 : vector<8x288xf32>
    %c0_37 = arith.constant 0 : index
    %c0_38 = arith.constant 0 : index
    %c37 = arith.constant 37 : index
    %41 = vector.load %arg2[%c0_37, %c0_38, %c37] : memref<1x4x326xf32, #tpu.memory_space<vmem>>, vector<1x4x288xf32>
    %42 = vector.shape_cast %41 : vector<1x4x288xf32> to vector<4x288xf32>
    %c7 = arith.constant 7 : index
    %c0_39 = arith.constant 0 : index
    %c0_40 = arith.constant 0 : index
    %43 = vector.load %arg1[%c7, %c0_39, %c0_40] : memref<9x8x4xf32, #tpu.memory_space<vmem>>, vector<1x8x4xf32>
    %44 = vector.shape_cast %43 : vector<1x8x4xf32> to vector<8x4xf32>
    %cst_41 = arith.constant dense<0.000000e+00> : vector<8x288xf32>
    %45 = tpu.matmul %44, %42, %cst_41 {dimension_numbers = #tpu.dot_dimension_numbers<[1], [0], [0], [1], [0, 0, 1, 1], [], []>} : vector<8x4xf32>, vector<4x288xf32>, vector<8x288xf32> -> vector<8x288xf32>
    %46 = arith.addf %40, %45 : vector<8x288xf32>
    %c0_42 = arith.constant 0 : index
    %c0_43 = arith.constant 0 : index
    %c38 = arith.constant 38 : index
    %47 = vector.load %arg2[%c0_42, %c0_43, %c38] : memref<1x4x326xf32, #tpu.memory_space<vmem>>, vector<1x4x288xf32>
    %48 = vector.shape_cast %47 : vector<1x4x288xf32> to vector<4x288xf32>
    %c8 = arith.constant 8 : index
    %c0_44 = arith.constant 0 : index
    %c0_45 = arith.constant 0 : index
    %49 = vector.load %arg1[%c8, %c0_44, %c0_45] : memref<9x8x4xf32, #tpu.memory_space<vmem>>, vector<1x8x4xf32>
    %50 = vector.shape_cast %49 : vector<1x8x4xf32> to vector<8x4xf32>
    %cst_46 = arith.constant dense<0.000000e+00> : vector<8x288xf32>
    %51 = tpu.matmul %50, %48, %cst_46 {dimension_numbers = #tpu.dot_dimension_numbers<[1], [0], [0], [1], [0, 0, 1, 1], [], []>} : vector<8x4xf32>, vector<4x288xf32>, vector<8x288xf32> -> vector<8x288xf32>
    %52 = arith.addf %46, %51 : vector<8x288xf32>
    %c0_47 = arith.constant 0 : index
    %c0_48 = arith.constant 0 : index
    %c0_49 = arith.constant 0 : index
    %53 = vector.load %arg3[%c0_47, %c0_48, %c0_49] : memref<1x8x288xf32, #tpu.memory_space<vmem>>, vector<1x8x288xf32>
    %54 = vector.shape_cast %53 : vector<1x8x288xf32> to vector<8x288xf32>
    %55 = vector.shape_cast %52 : vector<8x288xf32> to vector<1x8x288xf32>
    tpu.vector_store %arg3[%c0_47, %c0_48, %c0_49], %55 {strides = array<i32>} : memref<1x8x288xf32, #tpu.memory_space<vmem>>, vector<1x8x288xf32>,
    %56 = tpu.iota {dimensions = array<i32: 1>} : vector<1x288xi32>
    %c18_i32 = arith.constant 18 : i32
    %c0_i32 = arith.constant 0 : i32
    %57 = arith.cmpi eq, %c18_i32, %c0_i32 : i32
    %c1_i32 = arith.constant 1 : i32
    %58 = arith.select %57, %c1_i32, %c18_i32 : i32
    %59 = vector.broadcast %58 : i32 to vector<1x288xi32>
    %60 = arith.remsi %56, %59 : vector<1x288xi32>
    %c0_i32_50 = arith.constant 0 : i32
    %61 = vector.broadcast %c0_i32_50 : i32 to vector<1x288xi32>
    %62 = arith.cmpi ne, %60, %61 : vector<1x288xi32>
    %c0_i32_51 = arith.constant 0 : i32
    %63 = vector.broadcast %c0_i32_51 : i32 to vector<1x288xi32>
    %64 = arith.cmpi slt, %60, %63 : vector<1x288xi32>
    %c0_i32_52 = arith.constant 0 : i32
    %65 = arith.cmpi slt, %58, %c0_i32_52 : i32
    %66 = vector.broadcast %65 : i1 to vector<1x288xi1>
    %67 = vector.broadcast %66 : vector<1x288xi1> to vector<1x288xi1>
    %68 = arith.xori %64, %67 : vector<1x288xi1>
    %69 = arith.andi %68, %62 : vector<1x288xi1>
    %70 = vector.broadcast %58 : i32 to vector<1x288xi32>
    %71 = arith.addi %60, %70 : vector<1x288xi32>
    %72 = arith.select %69, %71, %60 : vector<1x288xi1>, vector<1x288xi32>
    %c16_i32 = arith.constant 16 : i32
    %73 = vector.broadcast %c16_i32 : i32 to vector<1x288xi32>
    %74 = arith.cmpi slt, %72, %73 : vector<1x288xi32>
    %cst_53 = arith.constant 0.000000e+00 : f32
    %75 = vector.shape_cast %74 : vector<1x288xi1> to vector<1x288xi1>
    %76 = vector.broadcast %75 : vector<1x288xi1> to vector<8x288xi1>
    %77 = vector.broadcast %cst_53 : f32 to vector<8x288xf32>
    %78 = arith.select %76, %52, %77 : vector<8x288xi1>, vector<8x288xf32>
    %cst_54 = arith.constant dense<0.000000e+00> : vector<8xf32>
    %79 = vector.multi_reduction <add>, %78, %cst_54 [1] : vector<8x288xf32> to vector<8xf32>
    %80 = vector.shape_cast %79 : vector<8xf32> to vector<8x1xf32>
    %81 = arith.mulf %78, %78 : vector<8x288xf32>
    %cst_55 = arith.constant dense<0.000000e+00> : vector<8xf32>
    %82 = vector.multi_reduction <add>, %81, %cst_55 [1] : vector<8x288xf32> to vector<8xf32>
    %83 = vector.shape_cast %82 : vector<8xf32> to vector<8x1xf32>
    %84 = tpu.concatenate %80, %83 in 1 : vector<8x1xf32>, vector<8x1xf32> -> vector<8x2xf32>
    %c0_56 = arith.constant 0 : index
    %c0_57 = arith.constant 0 : index
    %c0_58 = arith.constant 0 : index
    %85 = vector.load %arg4[%c0_56, %c0_57, %c0_58] : memref<1x8x2xf32, #tpu.memory_space<vmem>>, vector<1x8x2xf32>
    %86 = vector.shape_cast %85 : vector<1x8x2xf32> to vector<8x2xf32>
    %87 = vector.shape_cast %84 : vector<8x2xf32> to vector<1x8x2xf32>
    tpu.vector_store %arg4[%c0_56, %c0_57, %c0_58], %87 {strides = array<i32>} : memref<1x8x2xf32, #tpu.memory_space<vmem>>, vector<1x8x2xf32>,
    return
  }
  func.func @transform_0(%arg0: i32) -> (i32, i32, i32) {
    %c0_i32 = arith.constant 0 : i32
    %c0_i32_0 = arith.constant 0 : i32
    %c0_i32_1 = arith.constant 0 : i32
    %c0_i32_2 = arith.constant 0 : i32
    return %c0_i32, %c0_i32_0, %c0_i32_1 : i32, i32, i32
  }
  func.func @transform_1(%arg0: i32) -> (i32, i32, i32) {
    %c0_i32 = arith.constant 0 : i32
    %c0_i32_0 = arith.constant 0 : i32
    %c0_i32_1 = arith.constant 0 : i32
    return %arg0, %c0_i32, %c0_i32_0 : i32, i32, i32
  }
  func.func @transform_2(%arg0: i32) -> (i32, i32, i32) {
    %c0_i32 = arith.constant 0 : i32
    %c0_i32_0 = arith.constant 0 : i32
    %c0_i32_1 = arith.constant 0 : i32
    return %arg0, %c0_i32, %c0_i32_0 : i32, i32, i32
  }
  func.func @transform_3(%arg0: i32) -> (i32, i32, i32) {
    %c0_i32 = arith.constant 0 : i32
    %c0_i32_0 = arith.constant 0 : i32
    %c0_i32_1 = arith.constant 0 : i32
    return %arg0, %c0_i32, %c0_i32_0 : i32, i32, i32
  }
}

module attributes {stable_mosaic.version = 11 : i64} {
  func.func @_bn_relu_kernel(%arg0: i32, %arg1: i32, %arg2: memref<1x8x8x18xf32, #tpu.memory_space<vmem>>, %arg3: memref<8x1x16xf32, #tpu.memory_space<vmem>>, %arg4: memref<8x1x16xf32, #tpu.memory_space<vmem>>, %arg5: memref<1x8x8x16xf32, #tpu.memory_space<vmem>>) attributes {dimension_semantics = [#tpu.dimension_semantics<parallel>, #tpu.dimension_semantics<parallel>], iteration_bounds = array<i64: 2, 2>, scalar_prefetch = 0 : i64, scratch_operands = 0 : i64, tpu.core_type = #tpu.core_type<tc>, window_params = [{transform_indices = @transform_0, window_bounds = array<i64: 1, 8, 8, 18>}, {pipeline_mode = #tpu.pipeline_mode<synchronous>, transform_indices = @transform_1, window_bounds = array<i64: 8, 1, 16>}, {pipeline_mode = #tpu.pipeline_mode<synchronous>, transform_indices = @transform_2, window_bounds = array<i64: 8, 1, 16>}, {transform_indices = @transform_3, window_bounds = array<i64: 1, 8, 8, 16>}]} {
    %c0 = arith.constant 0 : index
    %c0_0 = arith.constant 0 : index
    %c0_1 = arith.constant 0 : index
    %c0_2 = arith.constant 0 : index
    %0 = vector.load %arg2[%c0, %c0_0, %c0_1, %c0_2] : memref<1x8x8x18xf32, #tpu.memory_space<vmem>>, vector<1x8x8x16xf32>
    %1 = vector.shape_cast %0 : vector<1x8x8x16xf32> to vector<8x8x16xf32>
    %c0_3 = arith.constant 0 : index
    %c0_4 = arith.constant 0 : index
    %c0_5 = arith.constant 0 : index
    %2 = vector.load %arg3[%c0_3, %c0_4, %c0_5] : memref<8x1x16xf32, #tpu.memory_space<vmem>>, vector<8x1x16xf32>
    %3 = vector.broadcast %2 : vector<8x1x16xf32> to vector<8x8x16xf32>
    %4 = arith.mulf %1, %3 : vector<8x8x16xf32>
    %c0_6 = arith.constant 0 : index
    %c0_7 = arith.constant 0 : index
    %c0_8 = arith.constant 0 : index
    %5 = vector.load %arg4[%c0_6, %c0_7, %c0_8] : memref<8x1x16xf32, #tpu.memory_space<vmem>>, vector<8x1x16xf32>
    %6 = vector.broadcast %5 : vector<8x1x16xf32> to vector<8x8x16xf32>
    %7 = arith.addf %4, %6 : vector<8x8x16xf32>
    %cst = arith.constant 0.000000e+00 : f32
    %8 = vector.broadcast %cst : f32 to vector<8x8x16xf32>
    %9 = arith.maximumf %7, %8 : vector<8x8x16xf32>
    %c0_9 = arith.constant 0 : index
    %c0_10 = arith.constant 0 : index
    %c0_11 = arith.constant 0 : index
    %c0_12 = arith.constant 0 : index
    %10 = vector.load %arg5[%c0_9, %c0_10, %c0_11, %c0_12] : memref<1x8x8x16xf32, #tpu.memory_space<vmem>>, vector<1x8x8x16xf32>
    %11 = vector.shape_cast %10 : vector<1x8x8x16xf32> to vector<8x8x16xf32>
    %12 = vector.shape_cast %9 : vector<8x8x16xf32> to vector<1x8x8x16xf32>
    tpu.vector_store %arg5[%c0_9, %c0_10, %c0_11, %c0_12], %12 {strides = array<i32>} : memref<1x8x8x16xf32, #tpu.memory_space<vmem>>, vector<1x8x8x16xf32>,
    return
  }
  func.func @transform_0(%arg0: i32, %arg1: i32) -> (i32, i32, i32, i32) {
    %c0_i32 = arith.constant 0 : i32
    %c0_i32_0 = arith.constant 0 : i32
    %c0_i32_1 = arith.constant 0 : i32
    return %arg0, %c0_i32, %arg1, %c0_i32_0 : i32, i32, i32, i32
  }
  func.func @transform_1(%arg0: i32, %arg1: i32) -> (i32, i32, i32) {
    %c0_i32 = arith.constant 0 : i32
    %c0_i32_0 = arith.constant 0 : i32
    %c0_i32_1 = arith.constant 0 : i32
    %c0_i32_2 = arith.constant 0 : i32
    return %c0_i32, %c0_i32_0, %c0_i32_1 : i32, i32, i32
  }
  func.func @transform_2(%arg0: i32, %arg1: i32) -> (i32, i32, i32) {
    %c0_i32 = arith.constant 0 : i32
    %c0_i32_0 = arith.constant 0 : i32
    %c0_i32_1 = arith.constant 0 : i32
    %c0_i32_2 = arith.constant 0 : i32
    return %c0_i32, %c0_i32_0, %c0_i32_1 : i32, i32, i32
  }
  func.func @transform_3(%arg0: i32, %arg1: i32) -> (i32, i32, i32, i32) {
    %c0_i32 = arith.constant 0 : i32
    %c0_i32_0 = arith.constant 0 : i32
    %c0_i32_1 = arith.constant 0 : i32
    return %arg0, %c0_i32, %arg1, %c0_i32_0 : i32, i32, i32, i32
  }
}

</mosaic_0001>

<llo_original>
// kernel: same_block2d.3
$region0: #{same_block2d.3}
  #allocation0 [shape = 'u32[]', space=smem, size = 0x4, offset = 0x4, fixed_abs, tag = 'smem constant byte address 0x4 - core index']
  #allocation1 [shape = 'u32[144,128]{1,0:T(1,128)}', space=vmem, size = 0x12000, scoped, tag = 'internal scratch']
  %s0 = inlined_call_operand.vmem [shape: f32[2,8,16,18], index: 0, kind: input, shape index: {}]
  %s1 = inlined_call_operand.vmem [shape: f32[8,1,16], index: 1, kind: input, shape index: {}]
  %s2 = inlined_call_operand.vmem [shape: f32[8,1,16], index: 2, kind: input, shape index: {}]
  %s3 = inlined_call_operand.hbm [shape: f32[2,8,16,16], index: 3, kind: output, shape index: {}]
  %s4 = sld [smem:[#allocation0]]
  $region83: #{same_block2d.3} parent=0
    _
  %s6 = ssub.s32 1, %s4
  %s7 = scalar_select 0, %s6, %s4
  $region1: #{same_block2d.3} parent=0
    #allocation2 [shape = 'u8[65536]{0}', space=vmem, size = 0x10000, scoped, tag = 'input window, operand 0']
    #allocation3 [shape = 'u8[65536]{0}', space=vmem, size = 0x10000, scoped, tag = 'output window, operand 0']
    #allocation4 [shape = 's32[2]{0}', space=sflag, size = 0x8, scoped, tag = 'scoped memory for same_block2d.3']
    %8 = vsyncpa [#allocation4], 0
    %s9 = scalar_lea.sflag [#allocation4], 1
    %10 = vsyncpa %s9, 0
    loop: start=0, step=1, limit=6
    $region2: #{same_block2d.3} parent=1 // loop_pre_header
      _
    $region3: #{same_block2d.3} parent=1 // loop_header
      %s12 = sphi 0, %s16
      %p13 = scmp.ge.s32.totalorder %s12, 6
      %s19 = sphi 0, %s31
      %s20 = sphi 0, %s27
      %s21 = sphi 0, %s19
      %s22 = sphi 0, %s20
      %s23 = sphi 0, %s21
      %s24 = sphi 0, %s22
      %s36 = sphi 0, %s38
      %s39 = sphi 0, %s36
      %s40 = sphi 0, %s39
      %s56 = sphi 0, %s40
      %s60 = sphi 0, %s60
      %s62 = sphi 0, %s60
      %s63 = sphi 0, %s62
      %s77 = sphi 0, %s63
      %s81 = sphi 0, %s81
      %s83 = sphi 0, %s81
      %s84 = sphi 0, %s83
      %s98 = sphi 0, %s84
      %s106 = sphi 0, %s108
      %s109 = sphi 0, %s106
      %s110 = sphi 0, %s109
      %s126 = sphi 0, %s110
    $region4: #{same_block2d.3} parent=1 // loop_header_branch
      %15 = sbr.rel (%p13) target = $region8
    $region5: #{same_block2d.3} parent=1 // loop_body
      %s17 = ssub.s32 %s12, 1
      %s18 = ssub.s32 %s12, 2
      %s25 = sadd.s32 1, %s20
      %p26 = scmp.ge.s32.totalorder %s25, 2
      %s27 = scalar_select %p26, 0, %s25
      %s28 = sadd.s32 1, %s19
      %s29 = scalar_select %p26, %s28, %s19
      %p30 = scmp.ge.s32.totalorder %s29, 2
      %s31 = scalar_select %p30, 0, %s29
      %s32 = ssub.s32 %s19, %s31
      %s33 = ssub.s32 %s20, %s27
      %s34 = sor.u32 %s32, %s33
      %p35 = scmp.eq.s32.totalorder %s34, 0
      %s37 = sadd.s32 %s36, 1
      %s38 = scalar_select %p35, %s36, %s37
      %p41 = pneg %p35
      %p42 = scmp.eq.s32.totalorder %s12, 3
      %p43 = por %p41, %p42
      %p44 = scmp.ne.s32.totalorder %s36, %s39
      %p45 = scmp.eq.s32.totalorder %s12, 0
      %p46 = por %p44, %p45
      %p47 = scmp.ne.s32.totalorder %s36, %s39
      %p48 = scmp.eq.s32.totalorder %s17, 3
      %p49 = por %p47, %p48
      %p50 = scmp.ne.s32.totalorder %s39, %s40
      %p51 = scmp.eq.s32.totalorder %s17, 0
      %p52 = por %p50, %p51
      %p53 = scmp.ne.s32.totalorder %s39, %s40
      %p54 = scmp.eq.s32.totalorder %s18, 3
      %p55 = por %p53, %p54
      %p57 = scmp.ne.s32.totalorder %s40, %s56
      %p58 = scmp.eq.s32.totalorder %s18, 0
      %p59 = por %p57, %p58
      %s61 = sadd.s32 %s60, 1
      %p64 = scmp.eq.s32.totalorder %s12, 3
      %p65 = scmp.ne.s32.totalorder %s60, %s62
      %p66 = scmp.eq.s32.totalorder %s12, 0
      %p67 = por %p65, %p66
      %p68 = scmp.ne.s32.totalorder %s60, %s62
      %p69 = scmp.eq.s32.totalorder %s17, 3
      %p70 = por %p68, %p69
      %p71 = scmp.ne.s32.totalorder %s62, %s63
      %p72 = scmp.eq.s32.totalorder %s17, 0
      %p73 = por %p71, %p72
      %p74 = scmp.ne.s32.totalorder %s62, %s63
      %p75 = scmp.eq.s32.totalorder %s18, 3
      %p76 = por %p74, %p75
      %p78 = scmp.ne.s32.totalorder %s63, %s77
      %p79 = scmp.eq.s32.totalorder %s18, 0
      %p80 = por %p78, %p79
      %s82 = sadd.s32 %s81, 1
      %p85 = scmp.eq.s32.totalorder %s12, 3
      %p86 = scmp.ne.s32.totalorder %s81, %s83
      %p87 = scmp.eq.s32.totalorder %s12, 0
      %p88 = por %p86, %p87
      %p89 = scmp.ne.s32.totalorder %s81, %s83
      %p90 = scmp.eq.s32.totalorder %s17, 3
      %p91 = por %p89, %p90
      %p92 = scmp.ne.s32.totalorder %s83, %s84
      %p93 = scmp.eq.s32.totalorder %s17, 0
      %p94 = por %p92, %p93
      %p95 = scmp.ne.s32.totalorder %s83, %s84
      %p96 = scmp.eq.s32.totalorder %s18, 3
      %p97 = por %p95, %p96
      %p99 = scmp.ne.s32.totalorder %s84, %s98
      %p100 = scmp.eq.s32.totalorder %s18, 0
      %p101 = por %p99, %p100
      %s102 = ssub.s32 %s19, %s31
      %s103 = ssub.s32 %s20, %s27
      %s104 = sor.u32 %s102, %s103
      %p105 = scmp.eq.s32.totalorder %s104, 0
      %s107 = sadd.s32 %s106, 1
      %s108 = scalar_select %p105, %s106, %s107
      %p111 = pneg %p105
      %p112 = scmp.eq.s32.totalorder %s12, 3
      %p113 = por %p111, %p112
      %p114 = scmp.ne.s32.totalorder %s106, %s109
      %p115 = scmp.eq.s32.totalorder %s12, 0
      %p116 = por %p114, %p115
      %p117 = scmp.ne.s32.totalorder %s106, %s109
      %p118 = scmp.eq.s32.totalorder %s17, 3
      %p119 = por %p117, %p118
      %p120 = scmp.ne.s32.totalorder %s109, %s110
      %p121 = scmp.eq.s32.totalorder %s17, 0
      %p122 = por %p120, %p121
      %p123 = scmp.ne.s32.totalorder %s109, %s110
      %p124 = scmp.eq.s32.totalorder %s18, 3
      %p125 = por %p123, %p124
      %p127 = scmp.ne.s32.totalorder %s110, %s126
      %p128 = scmp.eq.s32.totalorder %s18, 0
      %p129 = por %p127, %p128
      %p130 = scmp.le.s32.totalorder 1, %s12
      %p131 = scmp.lt.s32.totalorder %s12, 5
      %p132 = pnand %p130, %p131
      %p133 = pneg %p132
      // Predicated region
      $region9: #{same_block2d.3} parent=5 // pred_check
        _
      $region10: #{same_block2d.3} parent=5 // pred_check_branch
        %135 = sbr.rel (%p132) target = $region12
      $region11: #{same_block2d.3} parent=5 // pred_region
        %s136 = ssub.s32 %s12, 1
        // Predicated region
        $region13: #{same_block2d.3} parent=11 // pred_check
          %p137 = pneg %p73
        $region14: #{same_block2d.3} parent=11 // pred_check_branch
          %139 = sbr.rel (%p137) target = $region16
        $region15: #{same_block2d.3} parent=11 // pred_region
          _
        $region16: #{same_block2d.3} parent=11 // pred_fallthru
          _
        // Predicated region
        $region17: #{same_block2d.3} parent=11 // pred_check
          %p140 = pneg %p94
        $region18: #{same_block2d.3} parent=11 // pred_check_branch
          %142 = sbr.rel (%p140) target = $region20
        $region19: #{same_block2d.3} parent=11 // pred_region
          _
        $region20: #{same_block2d.3} parent=11 // pred_fallthru
          _
      $region12: #{same_block2d.3} parent=5 // pred_fallthru
        _
      %p143 = scmp.lt.s32.totalorder %s12, 4
      // Predicated region
      $region21: #{same_block2d.3} parent=5 // pred_check
        %p144 = pneg %p143
      $region22: #{same_block2d.3} parent=5 // pred_check_branch
        %146 = sbr.rel (%p144) target = $region24
      $region23: #{same_block2d.3} parent=5 // pred_region
        // Predicated region
        $region25: #{same_block2d.3} parent=23 // pred_check
          %p147 = pneg %p46
        $region26: #{same_block2d.3} parent=23 // pred_check_branch
          %149 = sbr.rel (%p147) target = $region28
        $region27: #{same_block2d.3} parent=23 // pred_region
          %s150 = sand.u32 %s36, 1
          %s151 = sand.u32 %s36, 1
          %s152 = smul.addr %s151, 64
          %s153 = scalar_lea.vmem [#allocation2], %s152
          %s154 = smul.addr %s19, 16
          %s155 = sadd.s32 %s20, %s154
          %s156 = smul.addr %s155, 8
          %s157 = scalar_lea.vmem %s0, %s156
          // Predicated region
          $region29: #{same_block2d.3} parent=27 // pred_check
            _
          $region30: #{same_block2d.3} parent=27 // pred_check_branch
            %159 = sbr.rel (0) target = $region32
          $region31: #{same_block2d.3} parent=27 // pred_region
            // Predicated region
            $region33: #{same_block2d.3} parent=31 // pred_check
              _
            $region34: #{same_block2d.3} parent=31 // pred_check_branch
              %161 = sbr.rel (0) target = $region36
            $region35: #{same_block2d.3} parent=31 // pred_region
              // Predicated region
              $region48: #{same_block2d.3} parent=35 // pred_check
                _
              $region49: #{same_block2d.3} parent=35 // pred_check_branch
                %190 = sbr.rel (0) target = $region51
              $region50: #{same_block2d.3} parent=35 // pred_region
                loop: start=0, step=1, limit=1
                $region52: #{same_block2d.3} parent=50 // loop_pre_header
                  _
                $region53: #{same_block2d.3} parent=50 // loop_header
                  %s192 = sphi 0, %s196
                  %p193 = scmp.ge.s32.totalorder %s192, 1
                  %s197 = sphi %s157, %s157
                  %s198 = sphi %s153, %s153
                $region54: #{same_block2d.3} parent=50 // loop_header_branch
                  %195 = sbr.rel (%p193) target = $region58
                $region55: #{same_block2d.3} parent=50 // loop_body
                  %v199 = vld [vmem:[%s197] sm:$0xff]
                  %200 = vst [vmem:[%s198] sm:$0xff] %v199
                  %v201 = vld [vmem:[%s197 + $0x10] sm:$0xff]
                  %202 = vst [vmem:[%s198 + $0x8] sm:$0xff] %v201
                  %v203 = vld [vmem:[%s197 + $0x20] sm:$0xff]
                  %204 = vst [vmem:[%s198 + $0x10] sm:$0xff] %v203
                  %v205 = vld [vmem:[%s197 + $0x30] sm:$0xff]
                  %206 = vst [vmem:[%s198 + $0x18] sm:$0xff] %v205
                  %v207 = vld [vmem:[%s197 + $0x40] sm:$0xff]
                  %208 = vst [vmem:[%s198 + $0x20] sm:$0xff] %v207
                  %v209 = vld [vmem:[%s197 + $0x50] sm:$0xff]
                  %210 = vst [vmem:[%s198 + $0x28] sm:$0xff] %v209
                  %v211 = vld [vmem:[%s197 + $0x60] sm:$0xff]
                  %212 = vst [vmem:[%s198 + $0x30] sm:$0xff] %v211
                  %v213 = vld [vmem:[%s197 + $0x70] sm:$0xff]
                  %214 = vst [vmem:[%s198 + $0x38] sm:$0xff] %v213
                $region56: #{same_block2d.3} parent=50 // loop_footer
                  %s196 = sadd.s32 1, %s192
                $region57: #{same_block2d.3} parent=50 // loop_footer_branch
                  %191 = sbr.rel target = $region53
                $region58: #{same_block2d.3} parent=50 // loop_exit
                  _
              $region51: #{same_block2d.3} parent=35 // pred_fallthru
                _
              // Predicated region
              $region59: #{same_block2d.3} parent=35 // pred_check
                _
              $region60: #{same_block2d.3} parent=35 // pred_check_branch
                %216 = sbr.rel target = $region62
              $region61: #{same_block2d.3} parent=35 // pred_region
                _
              $region62: #{same_block2d.3} parent=35 // pred_fallthru
                _
            $region36: #{same_block2d.3} parent=31 // pred_fallthru
              _
            // Predicated region
            $region37: #{same_block2d.3} parent=31 // pred_check
              _
            $region38: #{same_block2d.3} parent=31 // pred_check_branch
              %163 = sbr.rel target = $region40
            $region39: #{same_block2d.3} parent=31 // pred_region
              loop: start=0, step=1, limit=1
              $region41: #{same_block2d.3} parent=39 // loop_pre_header
                _
              $region42: #{same_block2d.3} parent=39 // loop_header
                %s166 = sphi 0, %s170
                %p167 = scmp.ge.s32.totalorder %s166, 1
                %s171 = sphi %s157, %s157
                %s172 = sphi %s153, %s153
              $region43: #{same_block2d.3} parent=39 // loop_header_branch
                %169 = sbr.rel (%p167) target = $region47
              $region44: #{same_block2d.3} parent=39 // loop_body
                %v173 = vld [vmem:[%s171] sm:$0xff]
                %174 = vst [vmem:[%s172] sm:$0xff] %v173
                %v175 = vld [vmem:[%s171 + $0x10] sm:$0xff]
                %176 = vst [vmem:[%s172 + $0x8] sm:$0xff] %v175
                %v177 = vld [vmem:[%s171 + $0x20] sm:$0xff]
                %178 = vst [vmem:[%s172 + $0x10] sm:$0xff] %v177
                %v179 = vld [vmem:[%s171 + $0x30] sm:$0xff]
                %180 = vst [vmem:[%s172 + $0x18] sm:$0xff] %v179
                %v181 = vld [vmem:[%s171 + $0x40] sm:$0xff]
                %182 = vst [vmem:[%s172 + $0x20] sm:$0xff] %v181
                %v183 = vld [vmem:[%s171 + $0x50] sm:$0xff]
                %184 = vst [vmem:[%s172 + $0x28] sm:$0xff] %v183
                %v185 = vld [vmem:[%s171 + $0x60] sm:$0xff]
                %186 = vst [vmem:[%s172 + $0x30] sm:$0xff] %v185
                %v187 = vld [vmem:[%s171 + $0x70] sm:$0xff]
                %188 = vst [vmem:[%s172 + $0x38] sm:$0xff] %v187
              $region45: #{same_block2d.3} parent=39 // loop_footer
                %s170 = sadd.s32 1, %s166
              $region46: #{same_block2d.3} parent=39 // loop_footer_branch
                %165 = sbr.rel target = $region42
              $region47: #{same_block2d.3} parent=39 // loop_exit
                _
            $region40: #{same_block2d.3} parent=31 // pred_fallthru
              _
          $region32: #{same_block2d.3} parent=27 // pred_fallthru
            _
          %217 = vnop
        $region28: #{same_block2d.3} parent=23 // pred_fallthru
          _
      $region24: #{same_block2d.3} parent=5 // pred_fallthru
        _
      %p218 = scmp.le.s32.totalorder 1, %s12
      %p219 = scmp.lt.s32.totalorder %s12, 5
      %p220 = pnand %p218, %p219
      %p221 = pneg %p220
      // Predicated region
      $region63: #{same_block2d.3} parent=5 // pred_check
        _
      $region64: #{same_block2d.3} parent=5 // pred_check_branch
        %223 = sbr.rel (%p220) target = $region66
      $region65: #{same_block2d.3} parent=5 // pred_region
        %s224 = ssub.s32 %s12, 1
        %s225 = sand.u32 %s39, 1
        %s226 = sand.u32 %s39, 1
        %s227 = smul.addr %s226, 64
        %s228 = scalar_lea.vmem [#allocation2], %s227
        // Predicated region
        $region67: #{same_block2d.3} parent=65 // pred_check
          %p229 = pneg %p52
        $region68: #{same_block2d.3} parent=65 // pred_check_branch
          %231 = sbr.rel (%p229) target = $region70
        $region69: #{same_block2d.3} parent=65 // pred_region
          _
        $region70: #{same_block2d.3} parent=65 // pred_fallthru
          _
        %s232 = sand.u32 %s39, 1
        %s233 = sand.u32 %s39, 1
        %s234 = smul.addr %s233, 64
        %s235 = scalar_lea.vmem [#allocation2], %s234
        %p236 = pneg %p52
        %p237 = pneg %p49
        %p238 = pneg %p73
        %p239 = pneg %p70
        %p240 = pneg %p94
        %p241 = pneg %p91
        %p242 = pneg %p122
        %p243 = pneg %p119
        %s244 = sand.u32 %s109, 1
        %s245 = scalar_lea.sflag [#allocation4], %s244
        %s246 = sand.u32 %s109, 1
        %s247 = smul.addr %s246, 64
        %s248 = scalar_lea.vmem [#allocation3], %s247
        %v249 = vld [vmem:[%s228] sm:$0xff]
        %v250 = vld [vmem:[%s228 + $0x8] sm:$0xff]
        %v251 = vld [vmem:[%s228 + $0x10] sm:$0xff]
        %v252 = vld [vmem:[%s228 + $0x18] sm:$0xff]
        %v253 = vld [vmem:[%s228 + $0x20] sm:$0xff]
        %v254 = vld [vmem:[%s228 + $0x28] sm:$0xff]
        %v255 = vld [vmem:[%s228 + $0x30] sm:$0xff]
        %v256 = vld [vmem:[%s228 + $0x38] sm:$0xff]
        %v257 = vld [vmem:[%s1] sm:$0x1]
        %v258 = vld [vmem:[%s1 + $0x1] sm:$0x1]
        %v259 = vld [vmem:[%s1 + $0x2] sm:$0x1]
        %v260 = vld [vmem:[%s1 + $0x3] sm:$0x1]
        %v261 = vld [vmem:[%s1 + $0x4] sm:$0x1]
        %v262 = vld [vmem:[%s1 + $0x5] sm:$0x1]
        %v263 = vld [vmem:[%s1 + $0x6] sm:$0x1]
        %v264 = vld [vmem:[%s1 + $0x7] sm:$0x1]
        %v273 = vlaneseq
        %v274 = vshrl.u32 %v273, 7
        %v275 = vsub.s32 0, %v274
        %v276 = vrot.slane %v257, %v275
        %v277 = vlaneseq
        %v278 = vshrl.u32 %v277, 7
        %v279 = vsub.s32 0, %v278
        %v280 = vrot.slane %v258, %v279
        %v281 = vlaneseq
        %v282 = vshrl.u32 %v281, 7
        %v283 = vsub.s32 0, %v282
        %v284 = vrot.slane %v259, %v283
        %v285 = vlaneseq
        %v286 = vshrl.u32 %v285, 7
        %v287 = vsub.s32 0, %v286
        %v288 = vrot.slane %v260, %v287
        %v289 = vlaneseq
        %v290 = vshrl.u32 %v289, 7
        %v291 = vsub.s32 0, %v290
        %v292 = vrot.slane %v261, %v291
        %v293 = vlaneseq
        %v294 = vshrl.u32 %v293, 7
        %v295 = vsub.s32 0, %v294
        %v296 = vrot.slane %v262, %v295
        %v297 = vlaneseq
        %v298 = vshrl.u32 %v297, 7
        %v299 = vsub.s32 0, %v298
        %v300 = vrot.slane %v263, %v299
        %v301 = vlaneseq
        %v302 = vshrl.u32 %v301, 7
        %v303 = vsub.s32 0, %v302
        %v304 = vrot.slane %v264, %v303
        %v313 = vmul.f32 %v249, %v276
        %v314 = vmul.f32 %v250, %v280
        %v315 = vmul.f32 %v251, %v284
        %v316 = vmul.f32 %v252, %v288
        %v317 = vmul.f32 %v253, %v292
        %v318 = vmul.f32 %v254, %v296
        %v319 = vmul.f32 %v255, %v300
        %v320 = vmul.f32 %v256, %v304
        %v321 = vld [vmem:[%s2] sm:$0x1]
        %v322 = vld [vmem:[%s2 + $0x1] sm:$0x1]
        %v323 = vld [vmem:[%s2 + $0x2] sm:$0x1]
        %v324 = vld [vmem:[%s2 + $0x3] sm:$0x1]
        %v325 = vld [vmem:[%s2 + $0x4] sm:$0x1]
        %v326 = vld [vmem:[%s2 + $0x5] sm:$0x1]
        %v327 = vld [vmem:[%s2 + $0x6] sm:$0x1]
        %v328 = vld [vmem:[%s2 + $0x7] sm:$0x1]
        %v337 = vlaneseq
        %v338 = vshrl.u32 %v337, 7
        %v339 = vsub.s32 0, %v338
        %v340 = vrot.slane %v321, %v339
        %v341 = vlaneseq
        %v342 = vshrl.u32 %v341, 7
        %v343 = vsub.s32 0, %v342
        %v344 = vrot.slane %v322, %v343
        %v345 = vlaneseq
        %v346 = vshrl.u32 %v345, 7
        %v347 = vsub.s32 0, %v346
        %v348 = vrot.slane %v323, %v347
        %v349 = vlaneseq
        %v350 = vshrl.u32 %v349, 7
        %v351 = vsub.s32 0, %v350
        %v352 = vrot.slane %v324, %v351
        %v353 = vlaneseq
        %v354 = vshrl.u32 %v353, 7
        %v355 = vsub.s32 0, %v354
        %v356 = vrot.slane %v325, %v355
        %v357 = vlaneseq
        %v358 = vshrl.u32 %v357, 7
        %v359 = vsub.s32 0, %v358
        %v360 = vrot.slane %v326, %v359
        %v361 = vlaneseq
        %v362 = vshrl.u32 %v361, 7
        %v363 = vsub.s32 0, %v362
        %v364 = vrot.slane %v327, %v363
        %v365 = vlaneseq
        %v366 = vshrl.u32 %v365, 7
        %v367 = vsub.s32 0, %v366
        %v368 = vrot.slane %v328, %v367
        %v377 = vadd.f32 %v313, %v340
        %v378 = vadd.f32 %v314, %v344
        %v379 = vadd.f32 %v315, %v348
        %v380 = vadd.f32 %v316, %v352
        %v381 = vadd.f32 %v317, %v356
        %v382 = vadd.f32 %v318, %v360
        %v383 = vadd.f32 %v319, %v364
        %v384 = vadd.f32 %v320, %v368
        %v385 = vmax.f32 %v377, 0.0
        %v386 = vmax.f32 %v378, 0.0
        %v387 = vmax.f32 %v379, 0.0
        %v388 = vmax.f32 %v380, 0.0
        %v389 = vmax.f32 %v381, 0.0
        %v390 = vmax.f32 %v382, 0.0
        %v391 = vmax.f32 %v383, 0.0
        %v392 = vmax.f32 %v384, 0.0
        %vm393 = vcmask 130048
        %394 = vst.msk [vmem:[%s248] sm:$0xff] %vm393, %v385
        %395 = vst.msk [vmem:[%s248 + $0x8] sm:$0xff] %vm393, %v386
        %396 = vst.msk [vmem:[%s248 + $0x10] sm:$0xff] %vm393, %v387
        %397 = vst.msk [vmem:[%s248 + $0x18] sm:$0xff] %vm393, %v388
        %398 = vst.msk [vmem:[%s248 + $0x20] sm:$0xff] %vm393, %v389
        %399 = vst.msk [vmem:[%s248 + $0x28] sm:$0xff] %vm393, %v390
        %400 = vst.msk [vmem:[%s248 + $0x30] sm:$0xff] %vm393, %v391
        %401 = vst.msk [vmem:[%s248 + $0x38] sm:$0xff] %vm393, %v392
        %s402 = sand.u32 %s109, 1
        %s403 = scalar_lea.sflag [#allocation4], %s402
        %s404 = sand.u32 %s109, 1
        %s405 = smul.addr %s404, 64
        %s406 = scalar_lea.vmem [#allocation3], %s405
        // Predicated region
        $region71: #{same_block2d.3} parent=65 // pred_check
          %p407 = pneg %p119
        $region72: #{same_block2d.3} parent=65 // pred_check_branch
          %409 = sbr.rel (%p407) target = $region74
        $region73: #{same_block2d.3} parent=65 // pred_region
          %s411 = ssub.s32 1024, 1024
          %412 = vsyncadd %s403, %s411
          %s413 = smul.addr %s21, 16
          %s414 = sadd.s32 %s22, %s413
          %s415 = smul.addr %s414, 128
          %s416 = scalar_lea.hbm %s3, %s415
          %s417 = sshll.u32 %s406, 4
          %s418 = int_to_ptr.vmem [resolvable:$true] %s417
          %423 = dma.vmem_to_hbm [thread:$0]  %s418, 1024, %s416, %s403, 128, 256, 8
        $region74: #{same_block2d.3} parent=65 // pred_fallthru
          _
      $region66: #{same_block2d.3} parent=5 // pred_fallthru
        _
      %p424 = scmp.le.s32.totalorder 2, %s12
      // Predicated region
      $region75: #{same_block2d.3} parent=5 // pred_check
        %p425 = pneg %p424
      $region76: #{same_block2d.3} parent=5 // pred_check_branch
        %427 = sbr.rel (%p425) target = $region78
      $region77: #{same_block2d.3} parent=5 // pred_region
        %s428 = ssub.s32 %s12, 2
        // Predicated region
        $region79: #{same_block2d.3} parent=77 // pred_check
          %p429 = pneg %p125
        $region80: #{same_block2d.3} parent=77 // pred_check_branch
          %431 = sbr.rel (%p429) target = $region82
        $region81: #{same_block2d.3} parent=77 // pred_region
          %s432 = sand.u32 %s110, 1
          %s433 = scalar_lea.sflag [#allocation4], %s432
          %s434 = sand.u32 %s110, 1
          %s435 = smul.addr %s434, 64
          %s436 = scalar_lea.vmem [#allocation3], %s435
          %437 = dma.done %s433, 1024
        $region82: #{same_block2d.3} parent=77 // pred_fallthru
          _
      $region78: #{same_block2d.3} parent=5 // pred_fallthru
        _
    $region6: #{same_block2d.3} parent=1 // loop_footer
      %s16 = sadd.s32 1, %s12
    $region7: #{same_block2d.3} parent=1 // loop_footer_branch
      %11 = sbr.rel target = $region3
    $region8: #{same_block2d.3} parent=1 // loop_exit
      _
    %438 = vsyncpa [#allocation4], 1
    %s439 = scalar_lea.sflag [#allocation4], 1
    %440 = vsyncpa %s439, 1

// kernel: same_block2d.2
$region0: #{same_block2d.2}
  #allocation0 [shape = 'u32[]', space=smem, size = 0x4, offset = 0x4, fixed_abs, tag = 'smem constant byte address 0x4 - core index']
  #allocation1 [shape = 'u32[144,128]{1,0:T(1,128)}', space=vmem, size = 0x12000, scoped, tag = 'internal scratch']
  %s0 = inlined_call_operand.vmem [shape: f32[9,8,4], index: 0, kind: input, shape index: {}]
  %s1 = inlined_call_operand.vmem [shape: f32[2,4,326], index: 1, kind: input, shape index: {}]
  %s2 = inlined_call_operand.vmem [shape: f32[2,8,288], index: 2, kind: output, shape index: {0}]
  %s3 = inlined_call_operand.vmem [shape: f32[2,8,2], index: 3, kind: output, shape index: {1}]
  %4 = xla_tuple %s2, %s3
  %s5 = sld [smem:[#allocation0]]
  $region49: #{same_block2d.2} parent=0
    _
  %s7 = ssub.s32 1, %s5
  %s8 = scalar_select 0, %s7, %s5
  loop: start=0, step=1, limit=4
  $region2: #{same_block2d.2} parent=0 // loop_pre_header
    _
  $region3: #{same_block2d.2} parent=0 // loop_header
    %s10 = sphi 0, %s14
    %p11 = scmp.ge.s32.totalorder %s10, 4
    %s18 = sphi 0, %s18
    %s20 = sphi 0, %s18
    %s21 = sphi 0, %s20
    %s35 = sphi 0, %s21
    %s41 = sphi 0, %s43
    %s44 = sphi 0, %s41
    %s45 = sphi 0, %s44
    %s61 = sphi 0, %s45
    %s67 = sphi 0, %s69
    %s70 = sphi 0, %s67
    %s71 = sphi 0, %s70
    %s87 = sphi 0, %s71
    %s93 = sphi 0, %s95
    %s96 = sphi 0, %s93
    %s97 = sphi 0, %s96
    %s113 = sphi 0, %s97
  $region4: #{same_block2d.2} parent=0 // loop_header_branch
    %13 = sbr.rel (%p11) target = $region8
  $region5: #{same_block2d.2} parent=0 // loop_body
    %s15 = ssub.s32 %s10, 1
    %s16 = ssub.s32 %s10, 2
    %s17 = sadd.s32 %s10, 1
    %s19 = sadd.s32 %s18, 1
    %p22 = scmp.eq.s32.totalorder %s10, 1
    %p23 = scmp.ne.s32.totalorder %s18, %s20
    %p24 = scmp.eq.s32.totalorder %s10, 0
    %p25 = por %p23, %p24
    %p26 = scmp.ne.s32.totalorder %s18, %s20
    %p27 = scmp.eq.s32.totalorder %s15, 1
    %p28 = por %p26, %p27
    %p29 = scmp.ne.s32.totalorder %s20, %s21
    %p30 = scmp.eq.s32.totalorder %s15, 0
    %p31 = por %p29, %p30
    %p32 = scmp.ne.s32.totalorder %s20, %s21
    %p33 = scmp.eq.s32.totalorder %s16, 1
    %p34 = por %p32, %p33
    %p36 = scmp.ne.s32.totalorder %s21, %s35
    %p37 = scmp.eq.s32.totalorder %s16, 0
    %p38 = por %p36, %p37
    %s39 = ssub.s32 %s10, %s17
    %p40 = scmp.eq.s32.totalorder %s39, 0
    %s42 = sadd.s32 %s41, 1
    %s43 = scalar_select %p40, %s41, %s42
    %p46 = pneg %p40
    %p47 = scmp.eq.s32.totalorder %s10, 1
    %p48 = por %p46, %p47
    %p49 = scmp.ne.s32.totalorder %s41, %s44
    %p50 = scmp.eq.s32.totalorder %s10, 0
    %p51 = por %p49, %p50
    %p52 = scmp.ne.s32.totalorder %s41, %s44
    %p53 = scmp.eq.s32.totalorder %s15, 1
    %p54 = por %p52, %p53
    %p55 = scmp.ne.s32.totalorder %s44, %s45
    %p56 = scmp.eq.s32.totalorder %s15, 0
    %p57 = por %p55, %p56
    %p58 = scmp.ne.s32.totalorder %s44, %s45
    %p59 = scmp.eq.s32.totalorder %s16, 1
    %p60 = por %p58, %p59
    %p62 = scmp.ne.s32.totalorder %s45, %s61
    %p63 = scmp.eq.s32.totalorder %s16, 0
    %p64 = por %p62, %p63
    %s65 = ssub.s32 %s10, %s17
    %p66 = scmp.eq.s32.totalorder %s65, 0
    %s68 = sadd.s32 %s67, 1
    %s69 = scalar_select %p66, %s67, %s68
    %p72 = pneg %p66
    %p73 = scmp.eq.s32.totalorder %s10, 1
    %p74 = por %p72, %p73
    %p75 = scmp.ne.s32.totalorder %s67, %s70
    %p76 = scmp.eq.s32.totalorder %s10, 0
    %p77 = por %p75, %p76
    %p78 = scmp.ne.s32.totalorder %s67, %s70
    %p79 = scmp.eq.s32.totalorder %s15, 1
    %p80 = por %p78, %p79
    %p81 = scmp.ne.s32.totalorder %s70, %s71
    %p82 = scmp.eq.s32.totalorder %s15, 0
    %p83 = por %p81, %p82
    %p84 = scmp.ne.s32.totalorder %s70, %s71
    %p85 = scmp.eq.s32.totalorder %s16, 1
    %p86 = por %p84, %p85
    %p88 = scmp.ne.s32.totalorder %s71, %s87
    %p89 = scmp.eq.s32.totalorder %s16, 0
    %p90 = por %p88, %p89
    %s91 = ssub.s32 %s10, %s17
    %p92 = scmp.eq.s32.totalorder %s91, 0
    %s94 = sadd.s32 %s93, 1
    %s95 = scalar_select %p92, %s93, %s94
    %p98 = pneg %p92
    %p99 = scmp.eq.s32.totalorder %s10, 1
    %p100 = por %p98, %p99
    %p101 = scmp.ne.s32.totalorder %s93, %s96
    %p102 = scmp.eq.s32.totalorder %s10, 0
    %p103 = por %p101, %p102
    %p104 = scmp.ne.s32.totalorder %s93, %s96
    %p105 = scmp.eq.s32.totalorder %s15, 1
    %p106 = por %p104, %p105
    %p107 = scmp.ne.s32.totalorder %s96, %s97
    %p108 = scmp.eq.s32.totalorder %s15, 0
    %p109 = por %p107, %p108
    %p110 = scmp.ne.s32.totalorder %s96, %s97
    %p111 = scmp.eq.s32.totalorder %s16, 1
    %p112 = por %p110, %p111
    %p114 = scmp.ne.s32.totalorder %s97, %s113
    %p115 = scmp.eq.s32.totalorder %s16, 0
    %p116 = por %p114, %p115
    %p117 = scmp.le.s32.totalorder 1, %s10
    %p118 = scmp.lt.s32.totalorder %s10, 3
    %p119 = pnand %p117, %p118
    %p120 = pneg %p119
    // Predicated region
    $region9: #{same_block2d.2} parent=5 // pred_check
      _
    $region10: #{same_block2d.2} parent=5 // pred_check_branch
      %122 = sbr.rel (%p119) target = $region12
    $region11: #{same_block2d.2} parent=5 // pred_region
      %s123 = ssub.s32 %s10, 1
      // Predicated region
      $region13: #{same_block2d.2} parent=11 // pred_check
        %p124 = pneg %p31
      $region14: #{same_block2d.2} parent=11 // pred_check_branch
        %126 = sbr.rel (%p124) target = $region16
      $region15: #{same_block2d.2} parent=11 // pred_region
        _
      $region16: #{same_block2d.2} parent=11 // pred_fallthru
        _
    $region12: #{same_block2d.2} parent=5 // pred_fallthru
      _
    %p127 = scmp.lt.s32.totalorder %s10, 2
    // Predicated region
    $region17: #{same_block2d.2} parent=5 // pred_check
      %p128 = pneg %p127
    $region18: #{same_block2d.2} parent=5 // pred_check_branch
      %130 = sbr.rel (%p128) target = $region20
    $region19: #{same_block2d.2} parent=5 // pred_region
      // Predicated region
      $region21: #{same_block2d.2} parent=19 // pred_check
        %p131 = pneg %p51
      $region22: #{same_block2d.2} parent=19 // pred_check_branch
        %133 = sbr.rel (%p131) target = $region24
      $region23: #{same_block2d.2} parent=19 // pred_region
        %p134 = scmp.lt.s32.totalorder %s10, 1
        %s135 = scalar_select %p134, %s10, 1
        %s136 = smul.addr %s135, 3
        %s137 = smul.addr %s136, 4
        %s138 = scalar_lea.vmem %s1, %s137
      $region24: #{same_block2d.2} parent=19 // pred_fallthru
        _
    $region20: #{same_block2d.2} parent=5 // pred_fallthru
      _
    %p139 = scmp.le.s32.totalorder 1, %s10
    %p140 = scmp.lt.s32.totalorder %s10, 3
    %p141 = pnand %p139, %p140
    %p142 = pneg %p141
    // Predicated region
    $region25: #{same_block2d.2} parent=5 // pred_check
      _
    $region26: #{same_block2d.2} parent=5 // pred_check_branch
      %144 = sbr.rel (%p141) target = $region28
    $region27: #{same_block2d.2} parent=5 // pred_region
      %s145 = ssub.s32 %s10, 1
      %p146 = pneg %p31
      %p147 = pneg %p28
      %p148 = scmp.lt.s32.totalorder %s15, 1
      %s149 = scalar_select %p148, %s15, 1
      %s150 = smul.addr %s149, 3
      %s151 = smul.addr %s150, 4
      %s152 = scalar_lea.vmem %s1, %s151
      %p153 = pneg %p57
      %p154 = pneg %p54
      %p155 = pneg %p83
      %p156 = pneg %p80
      %p157 = scmp.lt.s32.totalorder %s15, 1
      %s158 = scalar_select %p157, %s15, 1
      %s159 = smul.addr %s158, 3
      %s160 = smul.addr %s159, 8
      %s161 = scalar_lea.vmem %s2, %s160
      %p162 = pneg %p109
      %p163 = pneg %p106
      %p164 = scmp.lt.s32.totalorder %s15, 1
      %s165 = scalar_select %p164, %s15, 1
      %s166 = smul.addr %s165, 8
      %s167 = scalar_lea.vmem %s3, %s166
      %p168 = scmp.lt.s32.totalorder %s15, 1
      %s169 = scalar_select %p168, %s15, 1
      %s170 = smul.addr %s169, 3
      %s171 = smul.addr %s170, 4
      %s172 = scalar_lea.vmem %s1, %s171
      %p173 = scmp.lt.s32.totalorder %s15, 1
      %s174 = scalar_select %p173, %s15, 1
      %s175 = smul.addr %s174, 3
      %s176 = smul.addr %s175, 8
      %s177 = scalar_lea.vmem %s2, %s176
      %p178 = scmp.lt.s32.totalorder %s15, 1
      %s179 = scalar_select %p178, %s15, 1
      %s180 = smul.addr %s179, 8
      %s181 = scalar_lea.vmem %s3, %s180
      %v182 = vld [vmem:[%s172] sm:$0xff]
      %v183 = vld [vmem:[%s172 + $0x8] sm:$0xf]
      %v184 = vld [vmem:[%s0] sm:$0xff]
      %s185 = scalar_lea.vmem %s0, 8
      %v186 = vld [vmem:[%s185] sm:$0xff]
      %v189 = vcombine.high %v182, %v182
      %190 = vrot.lane.b32.xlu0 %v182, 127
      %v191 = vpop.permute.xlu0 %190
      %192 = vrot.lane.b32.xlu0 %v189, 127
      %v193 = vpop.permute.xlu0 %192
      %194 = vrot.lane.b32.xlu0 %v183, 127
      %v195 = vpop.permute.xlu0 %194
      %vm196 = vcmask 1039360
      %v197 = vsel %vm196, %v191, %v193
      %v198 = vsel %vm196, %v193, %v195
      %vm199 = vcmask 31744
      %v201 = vsel %vm199, %v186, 0
      %vm203 = vcmask 1043456
      %v204 = vsel %vm203, %v197, 0
      %v206 = vsel %vm203, %v198, 0
      %v208 = vsel %vm203, %v195, 0
      %210 = vmatprep.subr.mxu0 %v206
      %211 = vmatpush1.msra.mxu0 %v204
      %212 = vmatprep.subr.mxu0 0.0
      %213 = vmatpush1.msra.mxu0 0.0
      %214 = vmatprep.subr.mxu0 0.0
      %215 = vmatpush1.msra.mxu0 0.0
      %216 = vmatprep.subr.mxu0 0.0
      %217 = vmatpush1.msra.mxu0 0.0
      %218 = vmatprep.subr.mxu0 0.0
      %219 = vmatpush1.msra.mxu0 0.0
      %220 = vmatprep.subr.mxu0 0.0
      %221 = vmatpush1.msra.mxu0 0.0
      %222 = vmatprep.subr.mxu0 0.0
      %223 = vmatpush1.msra.mxu0 0.0
      %224 = vmatprep.subr.mxu0 0.0
      %225 = vmatpush1.msra.mxu0 0.0
      %226 = vmatprep.subr.mxu0 0.0
      %227 = vmatpush1.msra.mxu0 0.0
      %228 = vmatprep.subr.mxu0 0.0
      %229 = vmatpush1.msra.mxu0 0.0
      %230 = vmatprep.subr.mxu0 0.0
      %231 = vmatpush1.msra.mxu0 0.0
      %232 = vmatprep.subr.mxu0 0.0
      %233 = vmatpush1.msra.mxu0 0.0
      %234 = vmatprep.subr.mxu0 0.0
      %235 = vmatpush1.msra.mxu0 0.0
      %236 = vmatprep.subr.mxu0 0.0
      %237 = vmatpush1.msra.mxu0 0.0
      %238 = vmatprep.subr.mxu0 0.0
      %239 = vmatpush1.msra.mxu0 0.0
      %240 = vmatprep.subr.mxu0 0.0
      %241 = vmatpush1.msra.mxu0 0.0
      %242 = vmatprep.subr.mxu0 0.0
      %243 = vmatpush1.msra.mxu0 0.0
      %244 = vmatprep.subr.mxu0 0.0
      %245 = vmatpush1.msra.mxu0 0.0
      %246 = vmatprep.subr.mxu0 0.0
      %247 = vmatpush1.msra.mxu0 0.0
      %248 = vmatprep.subr.mxu0 0.0
      %249 = vmatpush1.msra.mxu0 0.0
      %250 = vmatprep.subr.mxu0 0.0
      %251 = vmatpush1.msra.mxu0 0.0
      %252 = vmatprep.subr.mxu0 0.0
      %253 = vmatpush1.msra.mxu0 0.0
      %254 = vmatprep.subr.mxu0 0.0
      %255 = vmatpush1.msra.mxu0 0.0
      %256 = vmatprep.subr.mxu0 0.0
      %257 = vmatpush1.msra.mxu0 0.0
      %258 = vmatprep.subr.mxu0 0.0
      %259 = vmatpush1.msra.mxu0 0.0
      %260 = vmatprep.subr.mxu0 0.0
      %261 = vmatpush1.msra.mxu0 0.0
      %262 = vmatprep.subr.mxu0 0.0
      %263 = vmatpush1.msra.mxu0 0.0
      %264 = vmatprep.subr.mxu0 0.0
      %265 = vmatpush1.msra.mxu0 0.0
      %266 = vmatprep.subr.mxu0 0.0
      %267 = vmatpush1.msra.mxu0 0.0
      %268 = vmatprep.subr.mxu0 0.0
      %269 = vmatpush1.msra.mxu0 0.0
      %270 = vmatprep.subr.mxu0 0.0
      %271 = vmatpush1.msra.mxu0 0.0
      %272 = vmatprep.subr.mxu0 0.0
      %273 = vmatpush1.msra.mxu0 0.0
      %274 = vmatprep.mubr.f32.mxu0 0.0
      %275 = vmatmul.mubr.f32.gmra.mrb[0].mxu0 %v201
      %v276 = vpop.f32.mrb[0].mxu0
      %v277 = vadd.f32 0.0, %v276
      %v278 = vpop.f32.mrb[0].mxu0
      %v279 = vadd.f32 0.0, %v278
      %280 = vdwg.mxu0
      %281 = vmatprep.subr.mxu0 0.0
      %282 = vmatpush1.msra.mxu0 %v208
      %283 = vmatprep.subr.mxu0 0.0
      %284 = vmatpush1.msra.mxu0 0.0
      %285 = vmatprep.subr.mxu0 0.0
      %286 = vmatpush1.msra.mxu0 0.0
      %287 = vmatprep.subr.mxu0 0.0
      %288 = vmatpush1.msra.mxu0 0.0
      %289 = vmatprep.subr.mxu0 0.0
      %290 = vmatpush1.msra.mxu0 0.0
      %291 = vmatprep.subr.mxu0 0.0
      %292 = vmatpush1.msra.mxu0 0.0
      %293 = vmatprep.subr.mxu0 0.0
      %294 = vmatpush1.msra.mxu0 0.0
      %295 = vmatprep.subr.mxu0 0.0
      %296 = vmatpush1.msra.mxu0 0.0
      %297 = vmatprep.subr.mxu0 0.0
      %298 = vmatpush1.msra.mxu0 0.0
      %299 = vmatprep.subr.mxu0 0.0
      %300 = vmatpush1.msra.mxu0 0.0
      %301 = vmatprep.subr.mxu0 0.0
      %302 = vmatpush1.msra.mxu0 0.0
      %303 = vmatprep.subr.mxu0 0.0
      %304 = vmatpush1.msra.mxu0 0.0
      %305 = vmatprep.subr.mxu0 0.0
      %306 = vmatpush1.msra.mxu0 0.0
      %307 = vmatprep.subr.mxu0 0.0
      %308 = vmatpush1.msra.mxu0 0.0
      %309 = vmatprep.subr.mxu0 0.0
      %310 = vmatpush1.msra.mxu0 0.0
      %311 = vmatprep.subr.mxu0 0.0
      %312 = vmatpush1.msra.mxu0 0.0
      %313 = vmatprep.subr.mxu0 0.0
      %314 = vmatpush1.msra.mxu0 0.0
      %315 = vmatprep.subr.mxu0 0.0
      %316 = vmatpush1.msra.mxu0 0.0
      %317 = vmatprep.subr.mxu0 0.0
      %318 = vmatpush1.msra.mxu0 0.0
      %319 = vmatprep.subr.mxu0 0.0
      %320 = vmatpush1.msra.mxu0 0.0
      %321 = vmatprep.subr.mxu0 0.0
      %322 = vmatpush1.msra.mxu0 0.0
      %323 = vmatprep.subr.mxu0 0.0
      %324 = vmatpush1.msra.mxu0 0.0
      %325 = vmatprep.subr.mxu0 0.0
      %326 = vmatpush1.msra.mxu0 0.0
      %327 = vmatprep.subr.mxu0 0.0
      %328 = vmatpush1.msra.mxu0 0.0
      %329 = vmatprep.subr.mxu0 0.0
      %330 = vmatpush1.msra.mxu0 0.0
      %331 = vmatprep.subr.mxu0 0.0
      %332 = vmatpush1.msra.mxu0 0.0
      %333 = vmatprep.subr.mxu0 0.0
      %334 = vmatpush1.msra.mxu0 0.0
      %335 = vmatprep.subr.mxu0 0.0
      %336 = vmatpush1.msra.mxu0 0.0
      %337 = vmatprep.subr.mxu0 0.0
      %338 = vmatpush1.msra.mxu0 0.0
      %339 = vmatprep.subr.mxu0 0.0
      %340 = vmatpush1.msra.mxu0 0.0
      %341 = vmatprep.subr.mxu0 0.0
      %342 = vmatpush1.msra.mxu0 0.0
      %343 = vmatprep.subr.mxu0 0.0
      %344 = vmatpush1.msra.mxu0 0.0
      %345 = vmatprep.mubr.f32.mxu0 0.0
      %346 = vmatmul.mubr.f32.gmra.mrb[0].mxu0 %v201
      %v347 = vpop.f32.mrb[0].mxu0
      %v348 = vadd.f32 0.0, %v347
      %v349 = vpop.f32.mrb[0].mxu0
      %350 = vdwg.mxu0
      %v352 = vsel %vm199, %v184, 0
      %v354 = vsel %vm203, %v182, 0
      %v356 = vsel %vm203, %v189, 0
      %v358 = vsel %vm203, %v183, 0
      %360 = vmatprep.subr.mxu0 %v356
      %361 = vmatpush1.msra.mxu0 %v354
      %362 = vmatprep.subr.mxu0 0.0
      %363 = vmatpush1.msra.mxu0 0.0
      %364 = vmatprep.subr.mxu0 0.0
      %365 = vmatpush1.msra.mxu0 0.0
      %366 = vmatprep.subr.mxu0 0.0
      %367 = vmatpush1.msra.mxu0 0.0
      %368 = vmatprep.subr.mxu0 0.0
      %369 = vmatpush1.msra.mxu0 0.0
      %370 = vmatprep.subr.mxu0 0.0
      %371 = vmatpush1.msra.mxu0 0.0
      %372 = vmatprep.subr.mxu0 0.0
      %373 = vmatpush1.msra.mxu0 0.0
      %374 = vmatprep.subr.mxu0 0.0
      %375 = vmatpush1.msra.mxu0 0.0
      %376 = vmatprep.subr.mxu0 0.0
      %377 = vmatpush1.msra.mxu0 0.0
      %378 = vmatprep.subr.mxu0 0.0
      %379 = vmatpush1.msra.mxu0 0.0
      %380 = vmatprep.subr.mxu0 0.0
      %381 = vmatpush1.msra.mxu0 0.0
      %382 = vmatprep.subr.mxu0 0.0
      %383 = vmatpush1.msra.mxu0 0.0
      %384 = vmatprep.subr.mxu0 0.0
      %385 = vmatpush1.msra.mxu0 0.0
      %386 = vmatprep.subr.mxu0 0.0
      %387 = vmatpush1.msra.mxu0 0.0
      %388 = vmatprep.subr.mxu0 0.0
      %389 = vmatpush1.msra.mxu0 0.0
      %390 = vmatprep.subr.mxu0 0.0
      %391 = vmatpush1.msra.mxu0 0.0
      %392 = vmatprep.subr.mxu0 0.0
      %393 = vmatpush1.msra.mxu0 0.0
      %394 = vmatprep.subr.mxu0 0.0
      %395 = vmatpush1.msra.mxu0 0.0
      %396 = vmatprep.subr.mxu0 0.0
      %397 = vmatpush1.msra.mxu0 0.0
      %398 = vmatprep.subr.mxu0 0.0
      %399 = vmatpush1.msra.mxu0 0.0
      %400 = vmatprep.subr.mxu0 0.0
      %401 = vmatpush1.msra.mxu0 0.0
      %402 = vmatprep.subr.mxu0 0.0
      %403 = vmatpush1.msra.mxu0 0.0
      %404 = vmatprep.subr.mxu0 0.0
      %405 = vmatpush1.msra.mxu0 0.0
      %406 = vmatprep.subr.mxu0 0.0
      %407 = vmatpush1.msra.mxu0 0.0
      %408 = vmatprep.subr.mxu0 0.0
      %409 = vmatpush1.msra.mxu0 0.0
      %410 = vmatprep.subr.mxu0 0.0
      %411 = vmatpush1.msra.mxu0 0.0
      %412 = vmatprep.subr.mxu0 0.0
      %413 = vmatpush1.msra.mxu0 0.0
      %414 = vmatprep.subr.mxu0 0.0
      %415 = vmatpush1.msra.mxu0 0.0
      %416 = vmatprep.subr.mxu0 0.0
      %417 = vmatpush1.msra.mxu0 0.0
      %418 = vmatprep.subr.mxu0 0.0
      %419 = vmatpush1.msra.mxu0 0.0
      %420 = vmatprep.subr.mxu0 0.0
      %421 = vmatpush1.msra.mxu0 0.0
      %422 = vmatprep.subr.mxu0 0.0
      %423 = vmatpush1.msra.mxu0 0.0
      %424 = vmatprep.mubr.f32.mxu0 0.0
      %425 = vmatmul.mubr.f32.gmra.mrb[0].mxu0 %v352
      %v426 = vpop.f32.mrb[0].mxu0
      %v427 = vadd.f32 %v277, %v426
      %v428 = vpop.f32.mrb[0].mxu0
      %v429 = vadd.f32 %v279, %v428
      %430 = vdwg.mxu0
      %431 = vmatprep.subr.mxu0 0.0
      %432 = vmatpush1.msra.mxu0 %v358
      %433 = vmatprep.subr.mxu0 0.0
      %434 = vmatpush1.msra.mxu0 0.0
      %435 = vmatprep.subr.mxu0 0.0
      %436 = vmatpush1.msra.mxu0 0.0
      %437 = vmatprep.subr.mxu0 0.0
      %438 = vmatpush1.msra.mxu0 0.0
      %439 = vmatprep.subr.mxu0 0.0
      %440 = vmatpush1.msra.mxu0 0.0
      %441 = vmatprep.subr.mxu0 0.0
      %442 = vmatpush1.msra.mxu0 0.0
      %443 = vmatprep.subr.mxu0 0.0
      %444 = vmatpush1.msra.mxu0 0.0
      %445 = vmatprep.subr.mxu0 0.0
      %446 = vmatpush1.msra.mxu0 0.0
      %447 = vmatprep.subr.mxu0 0.0
      %448 = vmatpush1.msra.mxu0 0.0
      %449 = vmatprep.subr.mxu0 0.0
      %450 = vmatpush1.msra.mxu0 0.0
      %451 = vmatprep.subr.mxu0 0.0
      %452 = vmatpush1.msra.mxu0 0.0
      %453 = vmatprep.subr.mxu0 0.0
      %454 = vmatpush1.msra.mxu0 0.0
      %455 = vmatprep.subr.mxu0 0.0
      %456 = vmatpush1.msra.mxu0 0.0
      %457 = vmatprep.subr.mxu0 0.0
      %458 = vmatpush1.msra.mxu0 0.0
      %459 = vmatprep.subr.mxu0 0.0
      %460 = vmatpush1.msra.mxu0 0.0
      %461 = vmatprep.subr.mxu0 0.0
      %462 = vmatpush1.msra.mxu0 0.0
      %463 = vmatprep.subr.mxu0 0.0
      %464 = vmatpush1.msra.mxu0 0.0
      %465 = vmatprep.subr.mxu0 0.0
      %466 = vmatpush1.msra.mxu0 0.0
      %467 = vmatprep.subr.mxu0 0.0
      %468 = vmatpush1.msra.mxu0 0.0
      %469 = vmatprep.subr.mxu0 0.0
      %470 = vmatpush1.msra.mxu0 0.0
      %471 = vmatprep.subr.mxu0 0.0
      %472 = vmatpush1.msra.mxu0 0.0
      %473 = vmatprep.subr.mxu0 0.0
      %474 = vmatpush1.msra.mxu0 0.0
      %475 = vmatprep.subr.mxu0 0.0
      %476 = vmatpush1.msra.mxu0 0.0
      %477 = vmatprep.subr.mxu0 0.0
      %478 = vmatpush1.msra.mxu0 0.0
      %479 = vmatprep.subr.mxu0 0.0
      %480 = vmatpush1.msra.mxu0 0.0
      %481 = vmatprep.subr.mxu0 0.0
      %482 = vmatpush1.msra.mxu0 0.0
      %483 = vmatprep.subr.mxu0 0.0
      %484 = vmatpush1.msra.mxu0 0.0
      %485 = vmatprep.subr.mxu0 0.0
      %486 = vmatpush1.msra.mxu0 0.0
      %487 = vmatprep.subr.mxu0 0.0
      %488 = vmatpush1.msra.mxu0 0.0
      %489 = vmatprep.subr.mxu0 0.0
      %490 = vmatpush1.msra.mxu0 0.0
      %491 = vmatprep.subr.mxu0 0.0
      %492 = vmatpush1.msra.mxu0 0.0
      %493 = vmatprep.subr.mxu0 0.0
      %494 = vmatpush1.msra.mxu0 0.0
      %495 = vmatprep.mubr.f32.mxu0 0.0
      %496 = vmatmul.mubr.f32.gmra.mrb[0].mxu0 %v352
      %v497 = vpop.f32.mrb[0].mxu0
      %v498 = vadd.f32 %v348, %v497
      %v499 = vpop.f32.mrb[0].mxu0
      %500 = vdwg.mxu0
      %v501 = vld [vmem:[%s172] sm:$0xff]
      %v502 = vld [vmem:[%s172 + $0x8] sm:$0xf]
      %s503 = scalar_lea.vmem %s0, 16
      %v504 = vld [vmem:[%s503] sm:$0xff]
      %v507 = vcombine.high %v501, %v501
      %508 = vrot.lane.b32.xlu0 %v501, 126
      %v509 = vpop.permute.xlu0 %508
      %510 = vrot.lane.b32.xlu0 %v507, 126
      %v511 = vpop.permute.xlu0 %510
      %512 = vrot.lane.b32.xlu0 %v502, 126
      %v513 = vpop.permute.xlu0 %512
      %vm514 = vcmask 1031168
      %v515 = vsel %vm514, %v509, %v511
      %v516 = vsel %vm514, %v511, %v513
      %v518 = vsel %vm199, %v504, 0
      %v520 = vsel %vm203, %v515, 0
      %v522 = vsel %vm203, %v516, 0
      %v524 = vsel %vm203, %v513, 0
      %526 = vmatprep.subr.mxu0 %v522
      %527 = vmatpush1.msra.mxu0 %v520
      %528 = vmatprep.subr.mxu0 0.0
      %529 = vmatpush1.msra.mxu0 0.0
      %530 = vmatprep.subr.mxu0 0.0
      %531 = vmatpush1.msra.mxu0 0.0
      %532 = vmatprep.subr.mxu0 0.0
      %533 = vmatpush1.msra.mxu0 0.0
      %534 = vmatprep.subr.mxu0 0.0
      %535 = vmatpush1.msra.mxu0 0.0
      %536 = vmatprep.subr.mxu0 0.0
      %537 = vmatpush1.msra.mxu0 0.0
      %538 = vmatprep.subr.mxu0 0.0
      %539 = vmatpush1.msra.mxu0 0.0
      %540 = vmatprep.subr.mxu0 0.0
      %541 = vmatpush1.msra.mxu0 0.0
      %542 = vmatprep.subr.mxu0 0.0
      %543 = vmatpush1.msra.mxu0 0.0
      %544 = vmatprep.subr.mxu0 0.0
      %545 = vmatpush1.msra.mxu0 0.0
      %546 = vmatprep.subr.mxu0 0.0
      %547 = vmatpush1.msra.mxu0 0.0
      %548 = vmatprep.subr.mxu0 0.0
      %549 = vmatpush1.msra.mxu0 0.0
      %550 = vmatprep.subr.mxu0 0.0
      %551 = vmatpush1.msra.mxu0 0.0
      %552 = vmatprep.subr.mxu0 0.0
      %553 = vmatpush1.msra.mxu0 0.0
      %554 = vmatprep.subr.mxu0 0.0
      %555 = vmatpush1.msra.mxu0 0.0
      %556 = vmatprep.subr.mxu0 0.0
      %557 = vmatpush1.msra.mxu0 0.0
      %558 = vmatprep.subr.mxu0 0.0
      %559 = vmatpush1.msra.mxu0 0.0
      %560 = vmatprep.subr.mxu0 0.0
      %561 = vmatpush1.msra.mxu0 0.0
      %562 = vmatprep.subr.mxu0 0.0
      %563 = vmatpush1.msra.mxu0 0.0
      %564 = vmatprep.subr.mxu0 0.0
      %565 = vmatpush1.msra.mxu0 0.0
      %566 = vmatprep.subr.mxu0 0.0
      %567 = vmatpush1.msra.mxu0 0.0
      %568 = vmatprep.subr.mxu0 0.0
      %569 = vmatpush1.msra.mxu0 0.0
      %570 = vmatprep.subr.mxu0 0.0
      %571 = vmatpush1.msra.mxu0 0.0
      %572 = vmatprep.subr.mxu0 0.0
      %573 = vmatpush1.msra.mxu0 0.0
      %574 = vmatprep.subr.mxu0 0.0
      %575 = vmatpush1.msra.mxu0 0.0
      %576 = vmatprep.subr.mxu0 0.0
      %577 = vmatpush1.msra.mxu0 0.0
      %578 = vmatprep.subr.mxu0 0.0
      %579 = vmatpush1.msra.mxu0 0.0
      %580 = vmatprep.subr.mxu0 0.0
      %581 = vmatpush1.msra.mxu0 0.0
      %582 = vmatprep.subr.mxu0 0.0
      %583 = vmatpush1.msra.mxu0 0.0
      %584 = vmatprep.subr.mxu0 0.0
      %585 = vmatpush1.msra.mxu0 0.0
      %586 = vmatprep.subr.mxu0 0.0
      %587 = vmatpush1.msra.mxu0 0.0
      %588 = vmatprep.subr.mxu0 0.0
      %589 = vmatpush1.msra.mxu0 0.0
      %590 = vmatprep.mubr.f32.mxu0 0.0
      %591 = vmatmul.mubr.f32.gmra.mrb[0].mxu0 %v518
      %v592 = vpop.f32.mrb[0].mxu0
      %v593 = vadd.f32 0.0, %v592
      %v594 = vpop.f32.mrb[0].mxu0
      %v595 = vadd.f32 0.0, %v594
      %596 = vdwg.mxu0
      %597 = vmatprep.subr.mxu0 0.0
      %598 = vmatpush1.msra.mxu0 %v524
      %599 = vmatprep.subr.mxu0 0.0
      %600 = vmatpush1.msra.mxu0 0.0
      %601 = vmatprep.subr.mxu0 0.0
      %602 = vmatpush1.msra.mxu0 0.0
      %603 = vmatprep.subr.mxu0 0.0
      %604 = vmatpush1.msra.mxu0 0.0
      %605 = vmatprep.subr.mxu0 0.0
      %606 = vmatpush1.msra.mxu0 0.0
      %607 = vmatprep.subr.mxu0 0.0
      %608 = vmatpush1.msra.mxu0 0.0
      %609 = vmatprep.subr.mxu0 0.0
      %610 = vmatpush1.msra.mxu0 0.0
      %611 = vmatprep.subr.mxu0 0.0
      %612 = vmatpush1.msra.mxu0 0.0
      %613 = vmatprep.subr.mxu0 0.0
      %614 = vmatpush1.msra.mxu0 0.0
      %615 = vmatprep.subr.mxu0 0.0
      %616 = vmatpush1.msra.mxu0 0.0
      %617 = vmatprep.subr.mxu0 0.0
      %618 = vmatpush1.msra.mxu0 0.0
      %619 = vmatprep.subr.mxu0 0.0
      %620 = vmatpush1.msra.mxu0 0.0
      %621 = vmatprep.subr.mxu0 0.0
      %622 = vmatpush1.msra.mxu0 0.0
      %623 = vmatprep.subr.mxu0 0.0
      %624 = vmatpush1.msra.mxu0 0.0
      %625 = vmatprep.subr.mxu0 0.0
      %626 = vmatpush1.msra.mxu0 0.0
      %627 = vmatprep.subr.mxu0 0.0
      %628 = vmatpush1.msra.mxu0 0.0
      %629 = vmatprep.subr.mxu0 0.0
      %630 = vmatpush1.msra.mxu0 0.0
      %631 = vmatprep.subr.mxu0 0.0
      %632 = vmatpush1.msra.mxu0 0.0
      %633 = vmatprep.subr.mxu0 0.0
      %634 = vmatpush1.msra.mxu0 0.0
      %635 = vmatprep.subr.mxu0 0.0
      %636 = vmatpush1.msra.mxu0 0.0
      %637 = vmatprep.subr.mxu0 0.0
      %638 = vmatpush1.msra.mxu0 0.0
      %639 = vmatprep.subr.mxu0 0.0
      %640 = vmatpush1.msra.mxu0 0.0
      %641 = vmatprep.subr.mxu0 0.0
      %642 = vmatpush1.msra.mxu0 0.0
      %643 = vmatprep.subr.mxu0 0.0
      %644 = vmatpush1.msra.mxu0 0.0
      %645 = vmatprep.subr.mxu0 0.0
      %646 = vmatpush1.msra.mxu0 0.0
      %647 = vmatprep.subr.mxu0 0.0
      %648 = vmatpush1.msra.mxu0 0.0
      %649 = vmatprep.subr.mxu0 0.0
      %650 = vmatpush1.msra.mxu0 0.0
      %651 = vmatprep.subr.mxu0 0.0
      %652 = vmatpush1.msra.mxu0 0.0
      %653 = vmatprep.subr.mxu0 0.0
      %654 = vmatpush1.msra.mxu0 0.0
      %655 = vmatprep.subr.mxu0 0.0
      %656 = vmatpush1.msra.mxu0 0.0
      %657 = vmatprep.subr.mxu0 0.0
      %658 = vmatpush1.msra.mxu0 0.0
      %659 = vmatprep.subr.mxu0 0.0
      %660 = vmatpush1.msra.mxu0 0.0
      %661 = vmatprep.mubr.f32.mxu0 0.0
      %662 = vmatmul.mubr.f32.gmra.mrb[0].mxu0 %v518
      %v663 = vpop.f32.mrb[0].mxu0
      %v664 = vadd.f32 0.0, %v663
      %v665 = vpop.f32.mrb[0].mxu0
      %666 = vdwg.mxu0
      %v667 = vadd.f32 %v427, %v593
      %v668 = vadd.f32 %v429, %v595
      %v669 = vadd.f32 %v498, %v664
      %v670 = vld [vmem:[%s172] sm:$0xff]
      %v671 = vld [vmem:[%s172 + $0x8] sm:$0xf]
      %s672 = scalar_lea.vmem %s0, 24
      %v673 = vld [vmem:[%s672] sm:$0xff]
      %v676 = vcombine.high %v670, %v670
      %677 = vrot.lane.b32.xlu0 %v670, 110
      %v678 = vpop.permute.xlu0 %677
      %679 = vrot.lane.b32.xlu0 %v676, 110
      %v680 = vpop.permute.xlu0 %679
      %681 = vrot.lane.b32.xlu0 %v671, 110
      %v682 = vpop.permute.xlu0 %681
      %vm683 = vcmask 900096
      %v684 = vsel %vm683, %v678, %v680
      %v685 = vsel %vm683, %v680, %v682
      %v687 = vsel %vm199, %v673, 0
      %v689 = vsel %vm203, %v684, 0
      %v691 = vsel %vm203, %v685, 0
      %v693 = vsel %vm203, %v682, 0
      %695 = vmatprep.subr.mxu0 %v691
      %696 = vmatpush1.msra.mxu0 %v689
      %697 = vmatprep.subr.mxu0 0.0
      %698 = vmatpush1.msra.mxu0 0.0
      %699 = vmatprep.subr.mxu0 0.0
      %700 = vmatpush1.msra.mxu0 0.0
      %701 = vmatprep.subr.mxu0 0.0
      %702 = vmatpush1.msra.mxu0 0.0
      %703 = vmatprep.subr.mxu0 0.0
      %704 = vmatpush1.msra.mxu0 0.0
      %705 = vmatprep.subr.mxu0 0.0
      %706 = vmatpush1.msra.mxu0 0.0
      %707 = vmatprep.subr.mxu0 0.0
      %708 = vmatpush1.msra.mxu0 0.0
      %709 = vmatprep.subr.mxu0 0.0
      %710 = vmatpush1.msra.mxu0 0.0
      %711 = vmatprep.subr.mxu0 0.0
      %712 = vmatpush1.msra.mxu0 0.0
      %713 = vmatprep.subr.mxu0 0.0
      %714 = vmatpush1.msra.mxu0 0.0
      %715 = vmatprep.subr.mxu0 0.0
      %716 = vmatpush1.msra.mxu0 0.0
      %717 = vmatprep.subr.mxu0 0.0
      %718 = vmatpush1.msra.mxu0 0.0
      %719 = vmatprep.subr.mxu0 0.0
      %720 = vmatpush1.msra.mxu0 0.0
      %721 = vmatprep.subr.mxu0 0.0
      %722 = vmatpush1.msra.mxu0 0.0
      %723 = vmatprep.subr.mxu0 0.0
      %724 = vmatpush1.msra.mxu0 0.0
      %725 = vmatprep.subr.mxu0 0.0
      %726 = vmatpush1.msra.mxu0 0.0
      %727 = vmatprep.subr.mxu0 0.0
      %728 = vmatpush1.msra.mxu0 0.0
      %729 = vmatprep.subr.mxu0 0.0
      %730 = vmatpush1.msra.mxu0 0.0
      %731 = vmatprep.subr.mxu0 0.0
      %732 = vmatpush1.msra.mxu0 0.0
      %733 = vmatprep.subr.mxu0 0.0
      %734 = vmatpush1.msra.mxu0 0.0
      %735 = vmatprep.subr.mxu0 0.0
      %736 = vmatpush1.msra.mxu0 0.0
      %737 = vmatprep.subr.mxu0 0.0
      %738 = vmatpush1.msra.mxu0 0.0
      %739 = vmatprep.subr.mxu0 0.0
      %740 = vmatpush1.msra.mxu0 0.0
      %741 = vmatprep.subr.mxu0 0.0
      %742 = vmatpush1.msra.mxu0 0.0
      %743 = vmatprep.subr.mxu0 0.0
      %744 = vmatpush1.msra.mxu0 0.0
      %745 = vmatprep.subr.mxu0 0.0
      %746 = vmatpush1.msra.mxu0 0.0
      %747 = vmatprep.subr.mxu0 0.0
      %748 = vmatpush1.msra.mxu0 0.0
      %749 = vmatprep.subr.mxu0 0.0
      %750 = vmatpush1.msra.mxu0 0.0
      %751 = vmatprep.subr.mxu0 0.0
      %752 = vmatpush1.msra.mxu0 0.0
      %753 = vmatprep.subr.mxu0 0.0
      %754 = vmatpush1.msra.mxu0 0.0
      %755 = vmatprep.subr.mxu0 0.0
      %756 = vmatpush1.msra.mxu0 0.0
      %757 = vmatprep.subr.mxu0 0.0
      %758 = vmatpush1.msra.mxu0 0.0
      %759 = vmatprep.mubr.f32.mxu0 0.0
      %760 = vmatmul.mubr.f32.gmra.mrb[0].mxu0 %v687
      %v761 = vpop.f32.mrb[0].mxu0
      %v762 = vadd.f32 0.0, %v761
      %v763 = vpop.f32.mrb[0].mxu0
      %v764 = vadd.f32 0.0, %v763
      %765 = vdwg.mxu0
      %766 = vmatprep.subr.mxu0 0.0
      %767 = vmatpush1.msra.mxu0 %v693
      %768 = vmatprep.subr.mxu0 0.0
      %769 = vmatpush1.msra.mxu0 0.0
      %770 = vmatprep.subr.mxu0 0.0
      %771 = vmatpush1.msra.mxu0 0.0
      %772 = vmatprep.subr.mxu0 0.0
      %773 = vmatpush1.msra.mxu0 0.0
      %774 = vmatprep.subr.mxu0 0.0
      %775 = vmatpush1.msra.mxu0 0.0
      %776 = vmatprep.subr.mxu0 0.0
      %777 = vmatpush1.msra.mxu0 0.0
      %778 = vmatprep.subr.mxu0 0.0
      %779 = vmatpush1.msra.mxu0 0.0
      %780 = vmatprep.subr.mxu0 0.0
      %781 = vmatpush1.msra.mxu0 0.0
      %782 = vmatprep.subr.mxu0 0.0
      %783 = vmatpush1.msra.mxu0 0.0
      %784 = vmatprep.subr.mxu0 0.0
      %785 = vmatpush1.msra.mxu0 0.0
      %786 = vmatprep.subr.mxu0 0.0
      %787 = vmatpush1.msra.mxu0 0.0
      %788 = vmatprep.subr.mxu0 0.0
      %789 = vmatpush1.msra.mxu0 0.0
      %790 = vmatprep.subr.mxu0 0.0
      %791 = vmatpush1.msra.mxu0 0.0
      %792 = vmatprep.subr.mxu0 0.0
      %793 = vmatpush1.msra.mxu0 0.0
      %794 = vmatprep.subr.mxu0 0.0
      %795 = vmatpush1.msra.mxu0 0.0
      %796 = vmatprep.subr.mxu0 0.0
      %797 = vmatpush1.msra.mxu0 0.0
      %798 = vmatprep.subr.mxu0 0.0
      %799 = vmatpush1.msra.mxu0 0.0
      %800 = vmatprep.subr.mxu0 0.0
      %801 = vmatpush1.msra.mxu0 0.0
      %802 = vmatprep.subr.mxu0 0.0
      %803 = vmatpush1.msra.mxu0 0.0
      %804 = vmatprep.subr.mxu0 0.0
      %805 = vmatpush1.msra.mxu0 0.0
      %806 = vmatprep.subr.mxu0 0.0
      %807 = vmatpush1.msra.mxu0 0.0
      %808 = vmatprep.subr.mxu0 0.0
      %809 = vmatpush1.msra.mxu0 0.0
      %810 = vmatprep.subr.mxu0 0.0
      %811 = vmatpush1.msra.mxu0 0.0
      %812 = vmatprep.subr.mxu0 0.0
      %813 = vmatpush1.msra.mxu0 0.0
      %814 = vmatprep.subr.mxu0 0.0
      %815 = vmatpush1.msra.mxu0 0.0
      %816 = vmatprep.subr.mxu0 0.0
      %817 = vmatpush1.msra.mxu0 0.0
      %818 = vmatprep.subr.mxu0 0.0
      %819 = vmatpush1.msra.mxu0 0.0
      %820 = vmatprep.subr.mxu0 0.0
      %821 = vmatpush1.msra.mxu0 0.0
      %822 = vmatprep.subr.mxu0 0.0
      %823 = vmatpush1.msra.mxu0 0.0
      %824 = vmatprep.subr.mxu0 0.0
      %825 = vmatpush1.msra.mxu0 0.0
      %826 = vmatprep.subr.mxu0 0.0
      %827 = vmatpush1.msra.mxu0 0.0
      %828 = vmatprep.subr.mxu0 0.0
      %829 = vmatpush1.msra.mxu0 0.0
      %830 = vmatprep.mubr.f32.mxu0 0.0
      %831 = vmatmul.mubr.f32.gmra.mrb[0].mxu0 %v687
      %v832 = vpop.f32.mrb[0].mxu0
      %v833 = vadd.f32 0.0, %v832
      %v834 = vpop.f32.mrb[0].mxu0
      %835 = vdwg.mxu0
      %v836 = vadd.f32 %v667, %v762
      %v837 = vadd.f32 %v668, %v764
      %v838 = vadd.f32 %v669, %v833
      %v839 = vld [vmem:[%s172] sm:$0xff]
      %v840 = vld [vmem:[%s172 + $0x8] sm:$0xf]
      %s841 = scalar_lea.vmem %s0, 32
      %v842 = vld [vmem:[%s841] sm:$0xff]
      %v845 = vcombine.high %v839, %v839
      %846 = vrot.lane.b32.xlu0 %v839, 109
      %v847 = vpop.permute.xlu0 %846
      %848 = vrot.lane.b32.xlu0 %v845, 109
      %v849 = vpop.permute.xlu0 %848
      %850 = vrot.lane.b32.xlu0 %v840, 109
      %v851 = vpop.permute.xlu0 %850
      %vm852 = vcmask 891904
      %v853 = vsel %vm852, %v847, %v849
      %v854 = vsel %vm852, %v849, %v851
      %v856 = vsel %vm199, %v842, 0
      %v858 = vsel %vm203, %v853, 0
      %v860 = vsel %vm203, %v854, 0
      %v862 = vsel %vm203, %v851, 0
      %864 = vmatprep.subr.mxu0 %v860
      %865 = vmatpush1.msra.mxu0 %v858
      %866 = vmatprep.subr.mxu0 0.0
      %867 = vmatpush1.msra.mxu0 0.0
      %868 = vmatprep.subr.mxu0 0.0
      %869 = vmatpush1.msra.mxu0 0.0
      %870 = vmatprep.subr.mxu0 0.0
      %871 = vmatpush1.msra.mxu0 0.0
      %872 = vmatprep.subr.mxu0 0.0
      %873 = vmatpush1.msra.mxu0 0.0
      %874 = vmatprep.subr.mxu0 0.0
      %875 = vmatpush1.msra.mxu0 0.0
      %876 = vmatprep.subr.mxu0 0.0
      %877 = vmatpush1.msra.mxu0 0.0
      %878 = vmatprep.subr.mxu0 0.0
      %879 = vmatpush1.msra.mxu0 0.0
      %880 = vmatprep.subr.mxu0 0.0
      %881 = vmatpush1.msra.mxu0 0.0
      %882 = vmatprep.subr.mxu0 0.0
      %883 = vmatpush1.msra.mxu0 0.0
      %884 = vmatprep.subr.mxu0 0.0
      %885 = vmatpush1.msra.mxu0 0.0
      %886 = vmatprep.subr.mxu0 0.0
      %887 = vmatpush1.msra.mxu0 0.0
      %888 = vmatprep.subr.mxu0 0.0
      %889 = vmatpush1.msra.mxu0 0.0
      %890 = vmatprep.subr.mxu0 0.0
      %891 = vmatpush1.msra.mxu0 0.0
      %892 = vmatprep.subr.mxu0 0.0
      %893 = vmatpush1.msra.mxu0 0.0
      %894 = vmatprep.subr.mxu0 0.0
      %895 = vmatpush1.msra.mxu0 0.0
      %896 = vmatprep.subr.mxu0 0.0
      %897 = vmatpush1.msra.mxu0 0.0
      %898 = vmatprep.subr.mxu0 0.0
      %899 = vmatpush1.msra.mxu0 0.0
      %900 = vmatprep.subr.mxu0 0.0
      %901 = vmatpush1.msra.mxu0 0.0
      %902 = vmatprep.subr.mxu0 0.0
      %903 = vmatpush1.msra.mxu0 0.0
      %904 = vmatprep.subr.mxu0 0.0
      %905 = vmatpush1.msra.mxu0 0.0
      %906 = vmatprep.subr.mxu0 0.0
      %907 = vmatpush1.msra.mxu0 0.0
      %908 = vmatprep.subr.mxu0 0.0
      %909 = vmatpush1.msra.mxu0 0.0
      %910 = vmatprep.subr.mxu0 0.0
      %911 = vmatpush1.msra.mxu0 0.0
      %912 = vmatprep.subr.mxu0 0.0
      %913 = vmatpush1.msra.mxu0 0.0
      %914 = vmatprep.subr.mxu0 0.0
      %915 = vmatpush1.msra.mxu0 0.0
      %916 = vmatprep.subr.mxu0 0.0
      %917 = vmatpush1.msra.mxu0 0.0
      %918 = vmatprep.subr.mxu0 0.0
      %919 = vmatpush1.msra.mxu0 0.0
      %920 = vmatprep.subr.mxu0 0.0
      %921 = vmatpush1.msra.mxu0 0.0
      %922 = vmatprep.subr.mxu0 0.0
      %923 = vmatpush1.msra.mxu0 0.0
      %924 = vmatprep.subr.mxu0 0.0
      %925 = vmatpush1.msra.mxu0 0.0
      %926 = vmatprep.subr.mxu0 0.0
      %927 = vmatpush1.msra.mxu0 0.0
      %928 = vmatprep.mubr.f32.mxu0 0.0
      %929 = vmatmul.mubr.f32.gmra.mrb[0].mxu0 %v856
      %v930 = vpop.f32.mrb[0].mxu0
      %v931 = vadd.f32 0.0, %v930
      %v932 = vpop.f32.mrb[0].mxu0
      %v933 = vadd.f32 0.0, %v932
      %934 = vdwg.mxu0
      %935 = vmatprep.subr.mxu0 0.0
      %936 = vmatpush1.msra.mxu0 %v862
      %937 = vmatprep.subr.mxu0 0.0
      %938 = vmatpush1.msra.mxu0 0.0
      %939 = vmatprep.subr.mxu0 0.0
      %940 = vmatpush1.msra.mxu0 0.0
      %941 = vmatprep.subr.mxu0 0.0
      %942 = vmatpush1.msra.mxu0 0.0
      %943 = vmatprep.subr.mxu0 0.0
      %944 = vmatpush1.msra.mxu0 0.0
      %945 = vmatprep.subr.mxu0 0.0
      %946 = vmatpush1.msra.mxu0 0.0
      %947 = vmatprep.subr.mxu0 0.0
      %948 = vmatpush1.msra.mxu0 0.0
      %949 = vmatprep.subr.mxu0 0.0
      %950 = vmatpush1.msra.mxu0 0.0
      %951 = vmatprep.subr.mxu0 0.0
      %952 = vmatpush1.msra.mxu0 0.0
      %953 = vmatprep.subr.mxu0 0.0
      %954 = vmatpush1.msra.mxu0 0.0
      %955 = vmatprep.subr.mxu0 0.0
      %956 = vmatpush1.msra.mxu0 0.0
      %957 = vmatprep.subr.mxu0 0.0
      %958 = vmatpush1.msra.mxu0 0.0
      %959 = vmatprep.subr.mxu0 0.0
      %960 = vmatpush1.msra.mxu0 0.0
      %961 = vmatprep.subr.mxu0 0.0
      %962 = vmatpush1.msra.mxu0 0.0
      %963 = vmatprep.subr.mxu0 0.0
      %964 = vmatpush1.msra.mxu0 0.0
      %965 = vmatprep.subr.mxu0 0.0
      %966 = vmatpush1.msra.mxu0 0.0
      %967 = vmatprep.subr.mxu0 0.0
      %968 = vmatpush1.msra.mxu0 0.0
      %969 = vmatprep.subr.mxu0 0.0
      %970 = vmatpush1.msra.mxu0 0.0
      %971 = vmatprep.subr.mxu0 0.0
      %972 = vmatpush1.msra.mxu0 0.0
      %973 = vmatprep.subr.mxu0 0.0
      %974 = vmatpush1.msra.mxu0 0.0
      %975 = vmatprep.subr.mxu0 0.0
      %976 = vmatpush1.msra.mxu0 0.0
      %977 = vmatprep.subr.mxu0 0.0
      %978 = vmatpush1.msra.mxu0 0.0
      %979 = vmatprep.subr.mxu0 0.0
      %980 = vmatpush1.msra.mxu0 0.0
      %981 = vmatprep.subr.mxu0 0.0
      %982 = vmatpush1.msra.mxu0 0.0
      %983 = vmatprep.subr.mxu0 0.0
      %984 = vmatpush1.msra.mxu0 0.0
      %985 = vmatprep.subr.mxu0 0.0
      %986 = vmatpush1.msra.mxu0 0.0
      %987 = vmatprep.subr.mxu0 0.0
      %988 = vmatpush1.msra.mxu0 0.0
      %989 = vmatprep.subr.mxu0 0.0
      %990 = vmatpush1.msra.mxu0 0.0
      %991 = vmatprep.subr.mxu0 0.0
      %992 = vmatpush1.msra.mxu0 0.0
      %993 = vmatprep.subr.mxu0 0.0
      %994 = vmatpush1.msra.mxu0 0.0
      %995 = vmatprep.subr.mxu0 0.0
      %996 = vmatpush1.msra.mxu0 0.0
      %997 = vmatprep.subr.mxu0 0.0
      %998 = vmatpush1.msra.mxu0 0.0
      %999 = vmatprep.mubr.f32.mxu0 0.0
      %1000 = vmatmul.mubr.f32.gmra.mrb[0].mxu0 %v856
      %v1001 = vpop.f32.mrb[0].mxu0
      %v1002 = vadd.f32 0.0, %v1001
      %v1003 = vpop.f32.mrb[0].mxu0
      %1004 = vdwg.mxu0
      %v1005 = vadd.f32 %v836, %v931
      %v1006 = vadd.f32 %v837, %v933
      %v1007 = vadd.f32 %v838, %v1002
      %v1008 = vld [vmem:[%s172] sm:$0xff]
      %v1009 = vld [vmem:[%s172 + $0x8] sm:$0xf]
      %s1010 = scalar_lea.vmem %s0, 40
      %v1011 = vld [vmem:[%s1010] sm:$0xff]
      %v1014 = vcombine.high %v1008, %v1008
      %1015 = vrot.lane.b32.xlu0 %v1008, 108
      %v1016 = vpop.permute.xlu0 %1015
      %1017 = vrot.lane.b32.xlu0 %v1014, 108
      %v1018 = vpop.permute.xlu0 %1017
      %1019 = vrot.lane.b32.xlu0 %v1009, 108
      %v1020 = vpop.permute.xlu0 %1019
      %vm1021 = vcmask 883712
      %v1022 = vsel %vm1021, %v1016, %v1018
      %v1023 = vsel %vm1021, %v1018, %v1020
      %v1025 = vsel %vm199, %v1011, 0
      %v1027 = vsel %vm203, %v1022, 0
      %v1029 = vsel %vm203, %v1023, 0
      %v1031 = vsel %vm203, %v1020, 0
      %1033 = vmatprep.subr.mxu0 %v1029
      %1034 = vmatpush1.msra.mxu0 %v1027
      %1035 = vmatprep.subr.mxu0 0.0
      %1036 = vmatpush1.msra.mxu0 0.0
      %1037 = vmatprep.subr.mxu0 0.0
      %1038 = vmatpush1.msra.mxu0 0.0
      %1039 = vmatprep.subr.mxu0 0.0
      %1040 = vmatpush1.msra.mxu0 0.0
      %1041 = vmatprep.subr.mxu0 0.0
      %1042 = vmatpush1.msra.mxu0 0.0
      %1043 = vmatprep.subr.mxu0 0.0
      %1044 = vmatpush1.msra.mxu0 0.0
      %1045 = vmatprep.subr.mxu0 0.0
      %1046 = vmatpush1.msra.mxu0 0.0
      %1047 = vmatprep.subr.mxu0 0.0
      %1048 = vmatpush1.msra.mxu0 0.0
      %1049 = vmatprep.subr.mxu0 0.0
      %1050 = vmatpush1.msra.mxu0 0.0
      %1051 = vmatprep.subr.mxu0 0.0
      %1052 = vmatpush1.msra.mxu0 0.0
      %1053 = vmatprep.subr.mxu0 0.0
      %1054 = vmatpush1.msra.mxu0 0.0
      %1055 = vmatprep.subr.mxu0 0.0
      %1056 = vmatpush1.msra.mxu0 0.0
      %1057 = vmatprep.subr.mxu0 0.0
      %1058 = vmatpush1.msra.mxu0 0.0
      %1059 = vmatprep.subr.mxu0 0.0
      %1060 = vmatpush1.msra.mxu0 0.0
      %1061 = vmatprep.subr.mxu0 0.0
      %1062 = vmatpush1.msra.mxu0 0.0
      %1063 = vmatprep.subr.mxu0 0.0
      %1064 = vmatpush1.msra.mxu0 0.0
      %1065 = vmatprep.subr.mxu0 0.0
      %1066 = vmatpush1.msra.mxu0 0.0
      %1067 = vmatprep.subr.mxu0 0.0
      %1068 = vmatpush1.msra.mxu0 0.0
      %1069 = vmatprep.subr.mxu0 0.0
      %1070 = vmatpush1.msra.mxu0 0.0
      %1071 = vmatprep.subr.mxu0 0.0
      %1072 = vmatpush1.msra.mxu0 0.0
      %1073 = vmatprep.subr.mxu0 0.0
      %1074 = vmatpush1.msra.mxu0 0.0
      %1075 = vmatprep.subr.mxu0 0.0
      %1076 = vmatpush1.msra.mxu0 0.0
      %1077 = vmatprep.subr.mxu0 0.0
      %1078 = vmatpush1.msra.mxu0 0.0
      %1079 = vmatprep.subr.mxu0 0.0
      %1080 = vmatpush1.msra.mxu0 0.0
      %1081 = vmatprep.subr.mxu0 0.0
      %1082 = vmatpush1.msra.mxu0 0.0
      %1083 = vmatprep.subr.mxu0 0.0
      %1084 = vmatpush1.msra.mxu0 0.0
      %1085 = vmatprep.subr.mxu0 0.0
      %1086 = vmatpush1.msra.mxu0 0.0
      %1087 = vmatprep.subr.mxu0 0.0
      %1088 = vmatpush1.msra.mxu0 0.0
      %1089 = vmatprep.subr.mxu0 0.0
      %1090 = vmatpush1.msra.mxu0 0.0
      %1091 = vmatprep.subr.mxu0 0.0
      %1092 = vmatpush1.msra.mxu0 0.0
      %1093 = vmatprep.subr.mxu0 0.0
      %1094 = vmatpush1.msra.mxu0 0.0
      %1095 = vmatprep.subr.mxu0 0.0
      %1096 = vmatpush1.msra.mxu0 0.0
      %1097 = vmatprep.mubr.f32.mxu0 0.0
      %1098 = vmatmul.mubr.f32.gmra.mrb[0].mxu0 %v1025
      %v1099 = vpop.f32.mrb[0].mxu0
      %v1100 = vadd.f32 0.0, %v1099
      %v1101 = vpop.f32.mrb[0].mxu0
      %v1102 = vadd.f32 0.0, %v1101
      %1103 = vdwg.mxu0
      %1104 = vmatprep.subr.mxu0 0.0
      %1105 = vmatpush1.msra.mxu0 %v1031
      %1106 = vmatprep.subr.mxu0 0.0
      %1107 = vmatpush1.msra.mxu0 0.0
      %1108 = vmatprep.subr.mxu0 0.0
      %1109 = vmatpush1.msra.mxu0 0.0
      %1110 = vmatprep.subr.mxu0 0.0
      %1111 = vmatpush1.msra.mxu0 0.0
      %1112 = vmatprep.subr.mxu0 0.0
      %1113 = vmatpush1.msra.mxu0 0.0
      %1114 = vmatprep.subr.mxu0 0.0
      %1115 = vmatpush1.msra.mxu0 0.0
      %1116 = vmatprep.subr.mxu0 0.0
      %1117 = vmatpush1.msra.mxu0 0.0
      %1118 = vmatprep.subr.mxu0 0.0
      %1119 = vmatpush1.msra.mxu0 0.0
      %1120 = vmatprep.subr.mxu0 0.0
      %1121 = vmatpush1.msra.mxu0 0.0
      %1122 = vmatprep.subr.mxu0 0.0
      %1123 = vmatpush1.msra.mxu0 0.0
      %1124 = vmatprep.subr.mxu0 0.0
      %1125 = vmatpush1.msra.mxu0 0.0
      %1126 = vmatprep.subr.mxu0 0.0
      %1127 = vmatpush1.msra.mxu0 0.0
      %1128 = vmatprep.subr.mxu0 0.0
      %1129 = vmatpush1.msra.mxu0 0.0
      %1130 = vmatprep.subr.mxu0 0.0
      %1131 = vmatpush1.msra.mxu0 0.0
      %1132 = vmatprep.subr.mxu0 0.0
      %1133 = vmatpush1.msra.mxu0 0.0
      %1134 = vmatprep.subr.mxu0 0.0
      %1135 = vmatpush1.msra.mxu0 0.0
      %1136 = vmatprep.subr.mxu0 0.0
      %1137 = vmatpush1.msra.mxu0 0.0
      %1138 = vmatprep.subr.mxu0 0.0
      %1139 = vmatpush1.msra.mxu0 0.0
      %1140 = vmatprep.subr.mxu0 0.0
      %1141 = vmatpush1.msra.mxu0 0.0
      %1142 = vmatprep.subr.mxu0 0.0
      %1143 = vmatpush1.msra.mxu0 0.0
      %1144 = vmatprep.subr.mxu0 0.0
      %1145 = vmatpush1.msra.mxu0 0.0
      %1146 = vmatprep.subr.mxu0 0.0
      %1147 = vmatpush1.msra.mxu0 0.0
      %1148 = vmatprep.subr.mxu0 0.0
      %1149 = vmatpush1.msra.mxu0 0.0
      %1150 = vmatprep.subr.mxu0 0.0
      %1151 = vmatpush1.msra.mxu0 0.0
      %1152 = vmatprep.subr.mxu0 0.0
      %1153 = vmatpush1.msra.mxu0 0.0
      %1154 = vmatprep.subr.mxu0 0.0
      %1155 = vmatpush1.msra.mxu0 0.0
      %1156 = vmatprep.subr.mxu0 0.0
      %1157 = vmatpush1.msra.mxu0 0.0
      %1158 = vmatprep.subr.mxu0 0.0
      %1159 = vmatpush1.msra.mxu0 0.0
      %1160 = vmatprep.subr.mxu0 0.0
      %1161 = vmatpush1.msra.mxu0 0.0
      %1162 = vmatprep.subr.mxu0 0.0
      %1163 = vmatpush1.msra.mxu0 0.0
      %1164 = vmatprep.subr.mxu0 0.0
      %1165 = vmatpush1.msra.mxu0 0.0
      %1166 = vmatprep.subr.mxu0 0.0
      %1167 = vmatpush1.msra.mxu0 0.0
      %1168 = vmatprep.mubr.f32.mxu0 0.0
      %1169 = vmatmul.mubr.f32.gmra.mrb[0].mxu0 %v1025
      %v1170 = vpop.f32.mrb[0].mxu0
      %v1171 = vadd.f32 0.0, %v1170
      %v1172 = vpop.f32.mrb[0].mxu0
      %1173 = vdwg.mxu0
      %v1174 = vadd.f32 %v1005, %v1100
      %v1175 = vadd.f32 %v1006, %v1102
      %v1176 = vadd.f32 %v1007, %v1171
      %v1177 = vld [vmem:[%s172] sm:$0xff]
      %v1178 = vld [vmem:[%s172 + $0x8] sm:$0xf]
      %s1179 = scalar_lea.vmem %s0, 48
      %v1180 = vld [vmem:[%s1179] sm:$0xff]
      %v1183 = vcombine.high %v1177, %v1177
      %1184 = vrot.lane.b32.xlu0 %v1177, 92
      %v1185 = vpop.permute.xlu0 %1184
      %1186 = vrot.lane.b32.xlu0 %v1183, 92
      %v1187 = vpop.permute.xlu0 %1186
      %1188 = vrot.lane.b32.xlu0 %v1178, 92
      %v1189 = vpop.permute.xlu0 %1188
      %vm1190 = vcmask 752640
      %v1191 = vsel %vm1190, %v1185, %v1187
      %v1192 = vsel %vm1190, %v1187, %v1189
      %v1194 = vsel %vm199, %v1180, 0
      %v1196 = vsel %vm203, %v1191, 0
      %v1198 = vsel %vm203, %v1192, 0
      %v1200 = vsel %vm203, %v1189, 0
      %1202 = vmatprep.subr.mxu0 %v1198
      %1203 = vmatpush1.msra.mxu0 %v1196
      %1204 = vmatprep.subr.mxu0 0.0
      %1205 = vmatpush1.msra.mxu0 0.0
      %1206 = vmatprep.subr.mxu0 0.0
      %1207 = vmatpush1.msra.mxu0 0.0
      %1208 = vmatprep.subr.mxu0 0.0
      %1209 = vmatpush1.msra.mxu0 0.0
      %1210 = vmatprep.subr.mxu0 0.0
      %1211 = vmatpush1.msra.mxu0 0.0
      %1212 = vmatprep.subr.mxu0 0.0
      %1213 = vmatpush1.msra.mxu0 0.0
      %1214 = vmatprep.subr.mxu0 0.0
      %1215 = vmatpush1.msra.mxu0 0.0
      %1216 = vmatprep.subr.mxu0 0.0
      %1217 = vmatpush1.msra.mxu0 0.0
      %1218 = vmatprep.subr.mxu0 0.0
      %1219 = vmatpush1.msra.mxu0 0.0
      %1220 = vmatprep.subr.mxu0 0.0
      %1221 = vmatpush1.msra.mxu0 0.0
      %1222 = vmatprep.subr.mxu0 0.0
      %1223 = vmatpush1.msra.mxu0 0.0
      %1224 = vmatprep.subr.mxu0 0.0
      %1225 = vmatpush1.msra.mxu0 0.0
      %1226 = vmatprep.subr.mxu0 0.0
      %1227 = vmatpush1.msra.mxu0 0.0
      %1228 = vmatprep.subr.mxu0 0.0
      %1229 = vmatpush1.msra.mxu0 0.0
      %1230 = vmatprep.subr.mxu0 0.0
      %1231 = vmatpush1.msra.mxu0 0.0
      %1232 = vmatprep.subr.mxu0 0.0
      %1233 = vmatpush1.msra.mxu0 0.0
      %1234 = vmatprep.subr.mxu0 0.0
      %1235 = vmatpush1.msra.mxu0 0.0
      %1236 = vmatprep.subr.mxu0 0.0
      %1237 = vmatpush1.msra.mxu0 0.0
      %1238 = vmatprep.subr.mxu0 0.0
      %1239 = vmatpush1.msra.mxu0 0.0
      %1240 = vmatprep.subr.mxu0 0.0
      %1241 = vmatpush1.msra.mxu0 0.0
      %1242 = vmatprep.subr.mxu0 0.0
      %1243 = vmatpush1.msra.mxu0 0.0
      %1244 = vmatprep.subr.mxu0 0.0
      %1245 = vmatpush1.msra.mxu0 0.0
      %1246 = vmatprep.subr.mxu0 0.0
      %1247 = vmatpush1.msra.mxu0 0.0
      %1248 = vmatprep.subr.mxu0 0.0
      %1249 = vmatpush1.msra.mxu0 0.0
      %1250 = vmatprep.subr.mxu0 0.0
      %1251 = vmatpush1.msra.mxu0 0.0
      %1252 = vmatprep.subr.mxu0 0.0
      %1253 = vmatpush1.msra.mxu0 0.0
      %1254 = vmatprep.subr.mxu0 0.0
      %1255 = vmatpush1.msra.mxu0 0.0
      %1256 = vmatprep.subr.mxu0 0.0
      %1257 = vmatpush1.msra.mxu0 0.0
      %1258 = vmatprep.subr.mxu0 0.0
      %1259 = vmatpush1.msra.mxu0 0.0
      %1260 = vmatprep.subr.mxu0 0.0
      %1261 = vmatpush1.msra.mxu0 0.0
      %1262 = vmatprep.subr.mxu0 0.0
      %1263 = vmatpush1.msra.mxu0 0.0
      %1264 = vmatprep.subr.mxu0 0.0
      %1265 = vmatpush1.msra.mxu0 0.0
      %1266 = vmatprep.mubr.f32.mxu0 0.0
      %1267 = vmatmul.mubr.f32.gmra.mrb[0].mxu0 %v1194
      %v1268 = vpop.f32.mrb[0].mxu0
      %v1269 = vadd.f32 0.0, %v1268
      %v1270 = vpop.f32.mrb[0].mxu0
      %v1271 = vadd.f32 0.0, %v1270
      %1272 = vdwg.mxu0
      %1273 = vmatprep.subr.mxu0 0.0
      %1274 = vmatpush1.msra.mxu0 %v1200
      %1275 = vmatprep.subr.mxu0 0.0
      %1276 = vmatpush1.msra.mxu0 0.0
      %1277 = vmatprep.subr.mxu0 0.0
      %1278 = vmatpush1.msra.mxu0 0.0
      %1279 = vmatprep.subr.mxu0 0.0
      %1280 = vmatpush1.msra.mxu0 0.0
      %1281 = vmatprep.subr.mxu0 0.0
      %1282 = vmatpush1.msra.mxu0 0.0
      %1283 = vmatprep.subr.mxu0 0.0
      %1284 = vmatpush1.msra.mxu0 0.0
      %1285 = vmatprep.subr.mxu0 0.0
      %1286 = vmatpush1.msra.mxu0 0.0
      %1287 = vmatprep.subr.mxu0 0.0
      %1288 = vmatpush1.msra.mxu0 0.0
      %1289 = vmatprep.subr.mxu0 0.0
      %1290 = vmatpush1.msra.mxu0 0.0
      %1291 = vmatprep.subr.mxu0 0.0
      %1292 = vmatpush1.msra.mxu0 0.0
      %1293 = vmatprep.subr.mxu0 0.0
      %1294 = vmatpush1.msra.mxu0 0.0
      %1295 = vmatprep.subr.mxu0 0.0
      %1296 = vmatpush1.msra.mxu0 0.0
      %1297 = vmatprep.subr.mxu0 0.0
      %1298 = vmatpush1.msra.mxu0 0.0
      %1299 = vmatprep.subr.mxu0 0.0
      %1300 = vmatpush1.msra.mxu0 0.0
      %1301 = vmatprep.subr.mxu0 0.0
      %1302 = vmatpush1.msra.mxu0 0.0
      %1303 = vmatprep.subr.mxu0 0.0
      %1304 = vmatpush1.msra.mxu0 0.0
      %1305 = vmatprep.subr.mxu0 0.0
      %1306 = vmatpush1.msra.mxu0 0.0
      %1307 = vmatprep.subr.mxu0 0.0
      %1308 = vmatpush1.msra.mxu0 0.0
      %1309 = vmatprep.subr.mxu0 0.0
      %1310 = vmatpush1.msra.mxu0 0.0
      %1311 = vmatprep.subr.mxu0 0.0
      %1312 = vmatpush1.msra.mxu0 0.0
      %1313 = vmatprep.subr.mxu0 0.0
      %1314 = vmatpush1.msra.mxu0 0.0
      %1315 = vmatprep.subr.mxu0 0.0
      %1316 = vmatpush1.msra.mxu0 0.0
      %1317 = vmatprep.subr.mxu0 0.0
      %1318 = vmatpush1.msra.mxu0 0.0
      %1319 = vmatprep.subr.mxu0 0.0
      %1320 = vmatpush1.msra.mxu0 0.0
      %1321 = vmatprep.subr.mxu0 0.0
      %1322 = vmatpush1.msra.mxu0 0.0
      %1323 = vmatprep.subr.mxu0 0.0
      %1324 = vmatpush1.msra.mxu0 0.0
      %1325 = vmatprep.subr.mxu0 0.0
      %1326 = vmatpush1.msra.mxu0 0.0
      %1327 = vmatprep.subr.mxu0 0.0
      %1328 = vmatpush1.msra.mxu0 0.0
      %1329 = vmatprep.subr.mxu0 0.0
      %1330 = vmatpush1.msra.mxu0 0.0
      %1331 = vmatprep.subr.mxu0 0.0
      %1332 = vmatpush1.msra.mxu0 0.0
      %1333 = vmatprep.subr.mxu0 0.0
      %1334 = vmatpush1.msra.mxu0 0.0
      %1335 = vmatprep.subr.mxu0 0.0
      %1336 = vmatpush1.msra.mxu0 0.0
      %1337 = vmatprep.mubr.f32.mxu0 0.0
      %1338 = vmatmul.mubr.f32.gmra.mrb[0].mxu0 %v1194
      %v1339 = vpop.f32.mrb[0].mxu0
      %v1340 = vadd.f32 0.0, %v1339
      %v1341 = vpop.f32.mrb[0].mxu0
      %1342 = vdwg.mxu0
      %v1343 = vadd.f32 %v1174, %v1269
      %v1344 = vadd.f32 %v1175, %v1271
      %v1345 = vadd.f32 %v1176, %v1340
      %v1346 = vld [vmem:[%s172] sm:$0xff]
      %v1347 = vld [vmem:[%s172 + $0x8] sm:$0xf]
      %s1348 = scalar_lea.vmem %s0, 56
      %v1349 = vld [vmem:[%s1348] sm:$0xff]
      %v1352 = vcombine.high %v1346, %v1346
      %1353 = vrot.lane.b32.xlu0 %v1346, 91
      %v1354 = vpop.permute.xlu0 %1353
      %1355 = vrot.lane.b32.xlu0 %v1352, 91
      %v1356 = vpop.permute.xlu0 %1355
      %1357 = vrot.lane.b32.xlu0 %v1347, 91
      %v1358 = vpop.permute.xlu0 %1357
      %vm1359 = vcmask 744448
      %v1360 = vsel %vm1359, %v1354, %v1356
      %v1361 = vsel %vm1359, %v1356, %v1358
      %v1363 = vsel %vm199, %v1349, 0
      %v1365 = vsel %vm203, %v1360, 0
      %v1367 = vsel %vm203, %v1361, 0
      %v1369 = vsel %vm203, %v1358, 0
      %1371 = vmatprep.subr.mxu0 %v1367
      %1372 = vmatpush1.msra.mxu0 %v1365
      %1373 = vmatprep.subr.mxu0 0.0
      %1374 = vmatpush1.msra.mxu0 0.0
      %1375 = vmatprep.subr.mxu0 0.0
      %1376 = vmatpush1.msra.mxu0 0.0
      %1377 = vmatprep.subr.mxu0 0.0
      %1378 = vmatpush1.msra.mxu0 0.0
      %1379 = vmatprep.subr.mxu0 0.0
      %1380 = vmatpush1.msra.mxu0 0.0
      %1381 = vmatprep.subr.mxu0 0.0
      %1382 = vmatpush1.msra.mxu0 0.0
      %1383 = vmatprep.subr.mxu0 0.0
      %1384 = vmatpush1.msra.mxu0 0.0
      %1385 = vmatprep.subr.mxu0 0.0
      %1386 = vmatpush1.msra.mxu0 0.0
      %1387 = vmatprep.subr.mxu0 0.0
      %1388 = vmatpush1.msra.mxu0 0.0
      %1389 = vmatprep.subr.mxu0 0.0
      %1390 = vmatpush1.msra.mxu0 0.0
      %1391 = vmatprep.subr.mxu0 0.0
      %1392 = vmatpush1.msra.mxu0 0.0
      %1393 = vmatprep.subr.mxu0 0.0
      %1394 = vmatpush1.msra.mxu0 0.0
      %1395 = vmatprep.subr.mxu0 0.0
      %1396 = vmatpush1.msra.mxu0 0.0
      %1397 = vmatprep.subr.mxu0 0.0
      %1398 = vmatpush1.msra.mxu0 0.0
      %1399 = vmatprep.subr.mxu0 0.0
      %1400 = vmatpush1.msra.mxu0 0.0
      %1401 = vmatprep.subr.mxu0 0.0
      %1402 = vmatpush1.msra.mxu0 0.0
      %1403 = vmatprep.subr.mxu0 0.0
      %1404 = vmatpush1.msra.mxu0 0.0
      %1405 = vmatprep.subr.mxu0 0.0
      %1406 = vmatpush1.msra.mxu0 0.0
      %1407 = vmatprep.subr.mxu0 0.0
      %1408 = vmatpush1.msra.mxu0 0.0
      %1409 = vmatprep.subr.mxu0 0.0
      %1410 = vmatpush1.msra.mxu0 0.0
      %1411 = vmatprep.subr.mxu0 0.0
      %1412 = vmatpush1.msra.mxu0 0.0
      %1413 = vmatprep.subr.mxu0 0.0
      %1414 = vmatpush1.msra.mxu0 0.0
      %1415 = vmatprep.subr.mxu0 0.0
      %1416 = vmatpush1.msra.mxu0 0.0
      %1417 = vmatprep.subr.mxu0 0.0
      %1418 = vmatpush1.msra.mxu0 0.0
      %1419 = vmatprep.subr.mxu0 0.0
      %1420 = vmatpush1.msra.mxu0 0.0
      %1421 = vmatprep.subr.mxu0 0.0
      %1422 = vmatpush1.msra.mxu0 0.0
      %1423 = vmatprep.subr.mxu0 0.0
      %1424 = vmatpush1.msra.mxu0 0.0
      %1425 = vmatprep.subr.mxu0 0.0
      %1426 = vmatpush1.msra.mxu0 0.0
      %1427 = vmatprep.subr.mxu0 0.0
      %1428 = vmatpush1.msra.mxu0 0.0
      %1429 = vmatprep.subr.mxu0 0.0
      %1430 = vmatpush1.msra.mxu0 0.0
      %1431 = vmatprep.subr.mxu0 0.0
      %1432 = vmatpush1.msra.mxu0 0.0
      %1433 = vmatprep.subr.mxu0 0.0
      %1434 = vmatpush1.msra.mxu0 0.0
      %1435 = vmatprep.mubr.f32.mxu0 0.0
      %1436 = vmatmul.mubr.f32.gmra.mrb[0].mxu0 %v1363
      %v1437 = vpop.f32.mrb[0].mxu0
      %v1438 = vadd.f32 0.0, %v1437
      %v1439 = vpop.f32.mrb[0].mxu0
      %v1440 = vadd.f32 0.0, %v1439
      %1441 = vdwg.mxu0
      %1442 = vmatprep.subr.mxu0 0.0
      %1443 = vmatpush1.msra.mxu0 %v1369
      %1444 = vmatprep.subr.mxu0 0.0
      %1445 = vmatpush1.msra.mxu0 0.0
      %1446 = vmatprep.subr.mxu0 0.0
      %1447 = vmatpush1.msra.mxu0 0.0
      %1448 = vmatprep.subr.mxu0 0.0
      %1449 = vmatpush1.msra.mxu0 0.0
      %1450 = vmatprep.subr.mxu0 0.0
      %1451 = vmatpush1.msra.mxu0 0.0
      %1452 = vmatprep.subr.mxu0 0.0
      %1453 = vmatpush1.msra.mxu0 0.0
      %1454 = vmatprep.subr.mxu0 0.0
      %1455 = vmatpush1.msra.mxu0 0.0
      %1456 = vmatprep.subr.mxu0 0.0
      %1457 = vmatpush1.msra.mxu0 0.0
      %1458 = vmatprep.subr.mxu0 0.0
      %1459 = vmatpush1.msra.mxu0 0.0
      %1460 = vmatprep.subr.mxu0 0.0
      %1461 = vmatpush1.msra.mxu0 0.0
      %1462 = vmatprep.subr.mxu0 0.0
      %1463 = vmatpush1.msra.mxu0 0.0
      %1464 = vmatprep.subr.mxu0 0.0
      %1465 = vmatpush1.msra.mxu0 0.0
      %1466 = vmatprep.subr.mxu0 0.0
      %1467 = vmatpush1.msra.mxu0 0.0
      %1468 = vmatprep.subr.mxu0 0.0
      %1469 = vmatpush1.msra.mxu0 0.0
      %1470 = vmatprep.subr.mxu0 0.0
      %1471 = vmatpush1.msra.mxu0 0.0
      %1472 = vmatprep.subr.mxu0 0.0
      %1473 = vmatpush1.msra.mxu0 0.0
      %1474 = vmatprep.subr.mxu0 0.0
      %1475 = vmatpush1.msra.mxu0 0.0
      %1476 = vmatprep.subr.mxu0 0.0
      %1477 = vmatpush1.msra.mxu0 0.0
      %1478 = vmatprep.subr.mxu0 0.0
      %1479 = vmatpush1.msra.mxu0 0.0
      %1480 = vmatprep.subr.mxu0 0.0
      %1481 = vmatpush1.msra.mxu0 0.0
      %1482 = vmatprep.subr.mxu0 0.0
      %1483 = vmatpush1.msra.mxu0 0.0
      %1484 = vmatprep.subr.mxu0 0.0
      %1485 = vmatpush1.msra.mxu0 0.0
      %1486 = vmatprep.subr.mxu0 0.0
      %1487 = vmatpush1.msra.mxu0 0.0
      %1488 = vmatprep.subr.mxu0 0.0
      %1489 = vmatpush1.msra.mxu0 0.0
      %1490 = vmatprep.subr.mxu0 0.0
      %1491 = vmatpush1.msra.mxu0 0.0
      %1492 = vmatprep.subr.mxu0 0.0
      %1493 = vmatpush1.msra.mxu0 0.0
      %1494 = vmatprep.subr.mxu0 0.0
      %1495 = vmatpush1.msra.mxu0 0.0
      %1496 = vmatprep.subr.mxu0 0.0
      %1497 = vmatpush1.msra.mxu0 0.0
      %1498 = vmatprep.subr.mxu0 0.0
      %1499 = vmatpush1.msra.mxu0 0.0
      %1500 = vmatprep.subr.mxu0 0.0
      %1501 = vmatpush1.msra.mxu0 0.0
      %1502 = vmatprep.subr.mxu0 0.0
      %1503 = vmatpush1.msra.mxu0 0.0
      %1504 = vmatprep.subr.mxu0 0.0
      %1505 = vmatpush1.msra.mxu0 0.0
      %1506 = vmatprep.mubr.f32.mxu0 0.0
      %1507 = vmatmul.mubr.f32.gmra.mrb[0].mxu0 %v1363
      %v1508 = vpop.f32.mrb[0].mxu0
      %v1509 = vadd.f32 0.0, %v1508
      %v1510 = vpop.f32.mrb[0].mxu0
      %1511 = vdwg.mxu0
      %v1512 = vadd.f32 %v1343, %v1438
      %v1513 = vadd.f32 %v1344, %v1440
      %v1514 = vadd.f32 %v1345, %v1509
      %v1515 = vld [vmem:[%s172] sm:$0xff]
      %v1516 = vld [vmem:[%s172 + $0x8] sm:$0xf]
      %s1517 = scalar_lea.vmem %s0, 64
      %v1518 = vld [vmem:[%s1517] sm:$0xff]
      %v1521 = vcombine.high %v1515, %v1515
      %1522 = vrot.lane.b32.xlu0 %v1515, 90
      %v1523 = vpop.permute.xlu0 %1522
      %1524 = vrot.lane.b32.xlu0 %v1521, 90
      %v1525 = vpop.permute.xlu0 %1524
      %1526 = vrot.lane.b32.xlu0 %v1516, 90
      %v1527 = vpop.permute.xlu0 %1526
      %vm1528 = vcmask 736256
      %v1529 = vsel %vm1528, %v1523, %v1525
      %v1530 = vsel %vm1528, %v1525, %v1527
      %v1532 = vsel %vm199, %v1518, 0
      %v1534 = vsel %vm203, %v1529, 0
      %v1536 = vsel %vm203, %v1530, 0
      %v1538 = vsel %vm203, %v1527, 0
      %1540 = vmatprep.subr.mxu0 %v1536
      %1541 = vmatpush1.msra.mxu0 %v1534
      %1542 = vmatprep.subr.mxu0 0.0
      %1543 = vmatpush1.msra.mxu0 0.0
      %1544 = vmatprep.subr.mxu0 0.0
      %1545 = vmatpush1.msra.mxu0 0.0
      %1546 = vmatprep.subr.mxu0 0.0
      %1547 = vmatpush1.msra.mxu0 0.0
      %1548 = vmatprep.subr.mxu0 0.0
      %1549 = vmatpush1.msra.mxu0 0.0
      %1550 = vmatprep.subr.mxu0 0.0
      %1551 = vmatpush1.msra.mxu0 0.0
      %1552 = vmatprep.subr.mxu0 0.0
      %1553 = vmatpush1.msra.mxu0 0.0
      %1554 = vmatprep.subr.mxu0 0.0
      %1555 = vmatpush1.msra.mxu0 0.0
      %1556 = vmatprep.subr.mxu0 0.0
      %1557 = vmatpush1.msra.mxu0 0.0
      %1558 = vmatprep.subr.mxu0 0.0
      %1559 = vmatpush1.msra.mxu0 0.0
      %1560 = vmatprep.subr.mxu0 0.0
      %1561 = vmatpush1.msra.mxu0 0.0
      %1562 = vmatprep.subr.mxu0 0.0
      %1563 = vmatpush1.msra.mxu0 0.0
      %1564 = vmatprep.subr.mxu0 0.0
      %1565 = vmatpush1.msra.mxu0 0.0
      %1566 = vmatprep.subr.mxu0 0.0
      %1567 = vmatpush1.msra.mxu0 0.0
      %1568 = vmatprep.subr.mxu0 0.0
      %1569 = vmatpush1.msra.mxu0 0.0
      %1570 = vmatprep.subr.mxu0 0.0
      %1571 = vmatpush1.msra.mxu0 0.0
      %1572 = vmatprep.subr.mxu0 0.0
      %1573 = vmatpush1.msra.mxu0 0.0
      %1574 = vmatprep.subr.mxu0 0.0
      %1575 = vmatpush1.msra.mxu0 0.0
      %1576 = vmatprep.subr.mxu0 0.0
      %1577 = vmatpush1.msra.mxu0 0.0
      %1578 = vmatprep.subr.mxu0 0.0
      %1579 = vmatpush1.msra.mxu0 0.0
      %1580 = vmatprep.subr.mxu0 0.0
      %1581 = vmatpush1.msra.mxu0 0.0
      %1582 = vmatprep.subr.mxu0 0.0
      %1583 = vmatpush1.msra.mxu0 0.0
      %1584 = vmatprep.subr.mxu0 0.0
      %1585 = vmatpush1.msra.mxu0 0.0
      %1586 = vmatprep.subr.mxu0 0.0
      %1587 = vmatpush1.msra.mxu0 0.0
      %1588 = vmatprep.subr.mxu0 0.0
      %1589 = vmatpush1.msra.mxu0 0.0
      %1590 = vmatprep.subr.mxu0 0.0
      %1591 = vmatpush1.msra.mxu0 0.0
      %1592 = vmatprep.subr.mxu0 0.0
      %1593 = vmatpush1.msra.mxu0 0.0
      %1594 = vmatprep.subr.mxu0 0.0
      %1595 = vmatpush1.msra.mxu0 0.0
      %1596 = vmatprep.subr.mxu0 0.0
      %1597 = vmatpush1.msra.mxu0 0.0
      %1598 = vmatprep.subr.mxu0 0.0
      %1599 = vmatpush1.msra.mxu0 0.0
      %1600 = vmatprep.subr.mxu0 0.0
      %1601 = vmatpush1.msra.mxu0 0.0
      %1602 = vmatprep.subr.mxu0 0.0
      %1603 = vmatpush1.msra.mxu0 0.0
      %1604 = vmatprep.mubr.f32.mxu0 0.0
      %1605 = vmatmul.mubr.f32.gmra.mrb[0].mxu0 %v1532
      %v1606 = vpop.f32.mrb[0].mxu0
      %v1607 = vadd.f32 0.0, %v1606
      %v1608 = vpop.f32.mrb[0].mxu0
      %v1609 = vadd.f32 0.0, %v1608
      %1610 = vdwg.mxu0
      %1611 = vmatprep.subr.mxu0 0.0
      %1612 = vmatpush1.msra.mxu0 %v1538
      %1613 = vmatprep.subr.mxu0 0.0
      %1614 = vmatpush1.msra.mxu0 0.0
      %1615 = vmatprep.subr.mxu0 0.0
      %1616 = vmatpush1.msra.mxu0 0.0
      %1617 = vmatprep.subr.mxu0 0.0
      %1618 = vmatpush1.msra.mxu0 0.0
      %1619 = vmatprep.subr.mxu0 0.0
      %1620 = vmatpush1.msra.mxu0 0.0
      %1621 = vmatprep.subr.mxu0 0.0
      %1622 = vmatpush1.msra.mxu0 0.0
      %1623 = vmatprep.subr.mxu0 0.0
      %1624 = vmatpush1.msra.mxu0 0.0
      %1625 = vmatprep.subr.mxu0 0.0
      %1626 = vmatpush1.msra.mxu0 0.0
      %1627 = vmatprep.subr.mxu0 0.0
      %1628 = vmatpush1.msra.mxu0 0.0
      %1629 = vmatprep.subr.mxu0 0.0
      %1630 = vmatpush1.msra.mxu0 0.0
      %1631 = vmatprep.subr.mxu0 0.0
      %1632 = vmatpush1.msra.mxu0 0.0
      %1633 = vmatprep.subr.mxu0 0.0
      %1634 = vmatpush1.msra.mxu0 0.0
      %1635 = vmatprep.subr.mxu0 0.0
      %1636 = vmatpush1.msra.mxu0 0.0
      %1637 = vmatprep.subr.mxu0 0.0
      %1638 = vmatpush1.msra.mxu0 0.0
      %1639 = vmatprep.subr.mxu0 0.0
      %1640 = vmatpush1.msra.mxu0 0.0
      %1641 = vmatprep.subr.mxu0 0.0
      %1642 = vmatpush1.msra.mxu0 0.0
      %1643 = vmatprep.subr.mxu0 0.0
      %1644 = vmatpush1.msra.mxu0 0.0
      %1645 = vmatprep.subr.mxu0 0.0
      %1646 = vmatpush1.msra.mxu0 0.0
      %1647 = vmatprep.subr.mxu0 0.0
      %1648 = vmatpush1.msra.mxu0 0.0
      %1649 = vmatprep.subr.mxu0 0.0
      %1650 = vmatpush1.msra.mxu0 0.0
      %1651 = vmatprep.subr.mxu0 0.0
      %1652 = vmatpush1.msra.mxu0 0.0
      %1653 = vmatprep.subr.mxu0 0.0
      %1654 = vmatpush1.msra.mxu0 0.0
      %1655 = vmatprep.subr.mxu0 0.0
      %1656 = vmatpush1.msra.mxu0 0.0
      %1657 = vmatprep.subr.mxu0 0.0
      %1658 = vmatpush1.msra.mxu0 0.0
      %1659 = vmatprep.subr.mxu0 0.0
      %1660 = vmatpush1.msra.mxu0 0.0
      %1661 = vmatprep.subr.mxu0 0.0
      %1662 = vmatpush1.msra.mxu0 0.0
      %1663 = vmatprep.subr.mxu0 0.0
      %1664 = vmatpush1.msra.mxu0 0.0
      %1665 = vmatprep.subr.mxu0 0.0
      %1666 = vmatpush1.msra.mxu0 0.0
      %1667 = vmatprep.subr.mxu0 0.0
      %1668 = vmatpush1.msra.mxu0 0.0
      %1669 = vmatprep.subr.mxu0 0.0
      %1670 = vmatpush1.msra.mxu0 0.0
      %1671 = vmatprep.subr.mxu0 0.0
      %1672 = vmatpush1.msra.mxu0 0.0
      %1673 = vmatprep.subr.mxu0 0.0
      %1674 = vmatpush1.msra.mxu0 0.0
      %1675 = vmatprep.mubr.f32.mxu0 0.0
      %1676 = vmatmul.mubr.f32.gmra.mrb[0].mxu0 %v1532
      %v1677 = vpop.f32.mrb[0].mxu0
      %v1678 = vadd.f32 0.0, %v1677
      %v1679 = vpop.f32.mrb[0].mxu0
      %1680 = vdwg.mxu0
      %v1681 = vadd.f32 %v1512, %v1607
      %v1682 = vadd.f32 %v1513, %v1609
      %v1683 = vadd.f32 %v1514, %v1678
      %1684 = vst [vmem:[%s177] sm:$0xff] %v1681
      %1685 = vst [vmem:[%s177 + $0x8] sm:$0xff] %v1682
      %vm1686 = vcmask 261120
      %1687 = vst.msk [vmem:[%s177 + $0x10] sm:$0xff] %vm1686, %v1683
      %v1688 = vlaneseq
      %v1689 = vand.u32 %v1688, 127
      %v1690 = vadd.s32 %v1689, 128
      %v1691 = vadd.s32 %v1689, 256
      %vm1692 = vcmp.lt.s32.totalorder %v1689, 0
      %v1693 = vsub.s32 0, %v1689
      %v1694 = vsel %vm1692, %v1693, %v1689
      %v1695 = vmul.u32.u64.compose %v1694, 3817748708
      %v1696 = vextract.low.u32 %v1695
      %v1697 = vextract.high.u32 %v1695
      %v1698 = vshrl.u32 %v1697, 4
      %v1699 = vmul.u32 %v1698, 18
      %v1700 = vsub.s32 %v1694, %v1699
      %v1701 = vsub.s32 0, %v1700
      %v1702 = vsel %vm1692, %v1701, %v1700
      %vm1703 = vcmp.lt.s32.totalorder %v1690, 0
      %v1704 = vsub.s32 0, %v1690
      %v1705 = vsel %vm1703, %v1704, %v1690
      %v1706 = vmul.u32.u64.compose %v1705, 3817748708
      %v1707 = vextract.low.u32 %v1706
      %v1708 = vextract.high.u32 %v1706
      %v1709 = vshrl.u32 %v1708, 4
      %v1710 = vmul.u32 %v1709, 18
      %v1711 = vsub.s32 %v1705, %v1710
      %v1712 = vsub.s32 0, %v1711
      %v1713 = vsel %vm1703, %v1712, %v1711
      %vm1714 = vcmp.lt.s32.totalorder %v1691, 0
      %v1715 = vsub.s32 0, %v1691
      %v1716 = vsel %vm1714, %v1715, %v1691
      %v1717 = vmul.u32.u64.compose %v1716, 3817748708
      %v1718 = vextract.low.u32 %v1717
      %v1719 = vextract.high.u32 %v1717
      %v1720 = vshrl.u32 %v1719, 4
      %v1721 = vmul.u32 %v1720, 18
      %v1722 = vsub.s32 %v1716, %v1721
      %v1723 = vsub.s32 0, %v1722
      %v1724 = vsel %vm1714, %v1723, %v1722
      %vm1725 = vcmp.ne.s32.totalorder %v1702, 0
      %vm1726 = vcmp.ne.s32.totalorder %v1713, 0
      %vm1727 = vcmp.ne.s32.totalorder %v1724, 0
      %vm1728 = vcmp.lt.s32.totalorder %v1702, 0
      %vm1729 = vcmp.lt.s32.totalorder %v1713, 0
      %vm1730 = vcmp.lt.s32.totalorder %v1724, 0
      %vm1731 = vmand %vm1728, %vm1725
      %vm1732 = vmand %vm1729, %vm1726
      %vm1733 = vmand %vm1730, %vm1727
      %v1734 = vadd.s32 %v1702, 18
      %v1735 = vadd.s32 %v1713, 18
      %v1736 = vadd.s32 %v1724, 18
      %v1737 = vsel %vm1731, %v1734, %v1702
      %v1738 = vsel %vm1732, %v1735, %v1713
      %v1739 = vsel %vm1733, %v1736, %v1724
      %vm1740 = vcmp.lt.s32.totalorder %v1737, 16
      %vm1741 = vcmp.lt.s32.totalorder %v1738, 16
      %vm1742 = vcmp.lt.s32.totalorder %v1739, 16
      %v1743 = vsel %vm1740, 1, 0
      %v1744 = vsel %vm1741, 1, 0
      %v1745 = vsel %vm1742, 1, 0
      %vm1746 = vcmp.eq.s32.totalorder %v1743, 1
      %vm1747 = vcmp.eq.s32.totalorder %v1744, 1
      %vm1748 = vcmp.eq.s32.totalorder %v1745, 1
      %v1749 = vsel %vm1746, %v1681, 0.0
      %v1750 = vsel %vm1747, %v1682, 0.0
      %v1751 = vsel %vm1748, %v1683, 0.0
      %v1752 = vadd.f32 %v1749, %v1750
      %v1753 = vsel %vm1686, %v1751, 0.0
      %v1754 = vadd.f32 %v1752, %v1753
      %1755 = vadd.xlane.f32.xlu0 %v1754
      %v1756 = vpop.xlane.xlu0 %1755
      %v1757 = vmul.f32 %v1749, %v1749
      %v1758 = vmul.f32 %v1750, %v1750
      %v1759 = vmul.f32 %v1751, %v1751
      %v1760 = vadd.f32 %v1757, %v1758
      %v1761 = vsel %vm1686, %v1759, 0.0
      %v1762 = vadd.f32 %v1760, %v1761
      %1763 = vadd.xlane.f32.xlu0 %v1762
      %v1764 = vpop.xlane.xlu0 %1763
      %vm1765 = vcmask 7168
      %v1766 = vsel %vm1765, %v1756, %v1764
      %vm1767 = vcmask 15360
      %1768 = vst.msk [vmem:[%s181] sm:$0xff] %vm1767, %v1766
      %p1769 = scmp.lt.s32.totalorder %s15, 1
      %s1770 = scalar_select %p1769, %s15, 1
      %s1771 = smul.addr %s1770, 3
      %s1772 = smul.addr %s1771, 8
      %s1773 = scalar_lea.vmem %s2, %s1772
      %p1774 = scmp.lt.s32.totalorder %s15, 1
      %s1775 = scalar_select %p1774, %s15, 1
      %s1776 = smul.addr %s1775, 8
      %s1777 = scalar_lea.vmem %s3, %s1776
      // Predicated region
      $region29: #{same_block2d.2} parent=27 // pred_check
        %p1778 = pneg %p80
      $region30: #{same_block2d.2} parent=27 // pred_check_branch
        %1780 = sbr.rel (%p1778) target = $region32
      $region31: #{same_block2d.2} parent=27 // pred_region
        _
      $region32: #{same_block2d.2} parent=27 // pred_fallthru
        _
      // Predicated region
      $region33: #{same_block2d.2} parent=27 // pred_check
        %p1781 = pneg %p106
      $region34: #{same_block2d.2} parent=27 // pred_check_branch
        %1783 = sbr.rel (%p1781) target = $region36
      $region35: #{same_block2d.2} parent=27 // pred_region
        _
      $region36: #{same_block2d.2} parent=27 // pred_fallthru
        _
    $region28: #{same_block2d.2} parent=5 // pred_fallthru
      _
    %p1784 = scmp.le.s32.totalorder 2, %s10
    // Predicated region
    $region37: #{same_block2d.2} parent=5 // pred_check
      %p1785 = pneg %p1784
    $region38: #{same_block2d.2} parent=5 // pred_check_branch
      %1787 = sbr.rel (%p1785) target = $region40
    $region39: #{same_block2d.2} parent=5 // pred_region
      %s1788 = ssub.s32 %s10, 2
      // Predicated region
      $region41: #{same_block2d.2} parent=39 // pred_check
        %p1789 = pneg %p86
      $region42: #{same_block2d.2} parent=39 // pred_check_branch
        %1791 = sbr.rel (%p1789) target = $region44
      $region43: #{same_block2d.2} parent=39 // pred_region
        %p1792 = scmp.lt.s32.totalorder %s16, 1
        %s1793 = scalar_select %p1792, %s16, 1
        %s1794 = smul.addr %s1793, 3
        %s1795 = smul.addr %s1794, 8
        %s1796 = scalar_lea.vmem %s2, %s1795
      $region44: #{same_block2d.2} parent=39 // pred_fallthru
        _
      // Predicated region
      $region45: #{same_block2d.2} parent=39 // pred_check
        %p1797 = pneg %p112
      $region46: #{same_block2d.2} parent=39 // pred_check_branch
        %1799 = sbr.rel (%p1797) target = $region48
      $region47: #{same_block2d.2} parent=39 // pred_region
        %p1800 = scmp.lt.s32.totalorder %s16, 1
        %s1801 = scalar_select %p1800, %s16, 1
        %s1802 = smul.addr %s1801, 8
        %s1803 = scalar_lea.vmem %s3, %s1802
      $region48: #{same_block2d.2} parent=39 // pred_fallthru
        _
    $region40: #{same_block2d.2} parent=5 // pred_fallthru
      _
  $region6: #{same_block2d.2} parent=0 // loop_footer
    %s14 = sadd.s32 1, %s10
  $region7: #{same_block2d.2} parent=0 // loop_footer_branch
    %9 = sbr.rel target = $region3
  $region8: #{same_block2d.2} parent=0 // loop_exit
    _

</llo_original>
